<compile_context>
chip_gen: v7x
topology: tpu7x:2x2x1
jax: 0.10.0
libtpu: 0.0.40
codegen_flags: <defaults>
</compile_context>

<pallas_src>
import functools
import math

import jax
import jax.numpy as jnp
from jax.experimental import pallas as pl
from jax.experimental.pallas import tpu as pltpu


# ----------------------------------------------------------------------------
# Pallas kernel: PAVAE forward for one batch tile (5 matmuls + elementwise)
# ----------------------------------------------------------------------------
def pavae_kernel(
    x_ref, eps_ref,
    wp_ref, bp_ref,        # pathway encoders, folded into one dense (G, Ppad) matrix
    we1_ref, be1_ref,      # encoder hidden layer
    wm_ref, bm_ref,        # encoder mean head
    wl_ref, bl_ref,        # encoder logvar head
    wd1_ref, bd1_ref,      # decoder hidden layer
    wd2_ref, bd2_ref,      # decoder output layer
    z_ref, xhat_ref, mean_ref, logvar_ref,
):
    bf16 = jnp.bfloat16
    x = x_ref[...]                                        # (TB, G) bf16

    # --- pathway activities: tanh(x @ Wp + bp) -------------------------------
    a = jnp.tanh(
        jnp.dot(x, wp_ref[...], preferred_element_type=jnp.float32) + bp_ref[...]
    )

    # --- encoder MLP: Linear -> ReLU -> (dropout: identity) -> Linear --------
    h1 = jnp.maximum(
        jnp.dot(a.astype(bf16), we1_ref[...], preferred_element_type=jnp.float32)
        + be1_ref[...],
        0.0,
    )
    h1b = h1.astype(bf16)

    # mean / logvar as two separate lane-aligned matmuls (no lane-64 split)
    mean = jnp.dot(h1b, wm_ref[...], preferred_element_type=jnp.float32) + bm_ref[...]
    logvar = jnp.dot(h1b, wl_ref[...], preferred_element_type=jnp.float32) + bl_ref[...]

    # --- reparameterize (reproduces z = mean + eps * logvar exactly) ---------
    z = mean + eps_ref[...] * logvar

    # --- decoder MLP: Linear -> ReLU -> (dropout: identity) -> Linear --------
    h2 = jnp.maximum(
        jnp.dot(z.astype(bf16), wd1_ref[...], preferred_element_type=jnp.float32)
        + bd1_ref[...],
        0.0,
    )
    xhat = (
        jnp.dot(h2.astype(bf16), wd2_ref[...], preferred_element_type=jnp.float32)
        + bd2_ref[...]
    )

    z_ref[...] = z
    xhat_ref[...] = xhat
    mean_ref[...] = mean
    logvar_ref[...] = logvar


# ----------------------------------------------------------------------------
# Wrapper
# ----------------------------------------------------------------------------
def _round_up(n, m):
    return (n + m - 1) // m * m


def _vmem_limit_bytes():
    # Generation-aware: half of physical VMEM, capped at 64 MiB.
    # (v5e/v6e: 128 MiB physical -> 64 MiB; v7x: 64 MiB physical -> 32 MiB.)
    try:
        cap = getattr(pltpu.get_tpu_info(), "vmem_capacity_bytes", 128 << 20)
    except Exception:
        cap = 128 << 20
    return int(min(cap // 2, 64 << 20))


@functools.partial(jax.jit, static_argnames=("encoding_dim", "batch_tile"))
def pavae_forward(x, eps, params, *, encoding_dim, batch_tile=128):
    """Runs the PAVAE forward pass (eval mode) in one batch-gridded Pallas call.

    Returns (z, x_hat, mean, logvar), mirroring torch's
    (z, decode(z), (z, mean, logvar)).

    batch_tile: rows per grid step. 128 keeps the v5e MXU fully fed; use 256
    on v6e/v7x for large batches.
    """
    B, genes_dim = x.shape
    (wp, bp, we1, be1, we2, be2, wd1, bd1, wd2, bd2) = params
    n_pathways = wp.shape[1]
    hidden = we1.shape[1]
    bf16 = jnp.bfloat16

    # --- pad pathway axis to a lane-dense multiple of 128 (zeros => exact) ---
    p_pad = _round_up(max(n_pathways, 1), 128)
    wp_p = jnp.zeros((genes_dim, p_pad), bf16).at[:, :n_pathways].set(wp.astype(bf16))
    bp_p = jnp.zeros((1, p_pad), jnp.float32).at[:, :n_pathways].set(bp)
    we1_p = jnp.zeros((p_pad, hidden), bf16).at[:n_pathways, :].set(we1.astype(bf16))

    # --- split the mean||logvar head into two lane-aligned matmuls -----------
    wm = we2[:, :encoding_dim].astype(bf16)
    wl = we2[:, encoding_dim:].astype(bf16)
    bm = be2[:, :encoding_dim]
    bl = be2[:, encoding_dim:]

    wd1_b = wd1.astype(bf16)
    wd2_b = wd2.astype(bf16)

    # --- pad batch up to the tile size and grid over it ----------------------
    tb = batch_tile
    b_pad = _round_up(B, tb)
    x_p = jnp.zeros((b_pad, genes_dim), bf16).at[:B, :].set(x.astype(bf16))
    eps_p = jnp.zeros((b_pad, encoding_dim), jnp.float32).at[:B, :].set(eps)
    nb = b_pad // tb

    def tiled(shape):
        return pl.BlockSpec(shape, lambda i: (i, 0))

    def resident(shape):
        zeros = (0,) * len(shape)
        return pl.BlockSpec(shape, lambda i, _z=zeros: _z)

    inputs = (x_p, eps_p, wp_p, bp_p, we1_p, be1, wm, bm, wl, bl,
              wd1_b, bd1, wd2_b, bd2)
    in_specs = [
        tiled((tb, genes_dim)),
        tiled((tb, encoding_dim)),
    ] + [resident(a.shape) for a in inputs[2:]]

    out_shapes = (
        jax.ShapeDtypeStruct((b_pad, encoding_dim), jnp.float32),   # z
        jax.ShapeDtypeStruct((b_pad, genes_dim), jnp.float32),      # x_hat
        jax.ShapeDtypeStruct((b_pad, encoding_dim), jnp.float32),   # mean
        jax.ShapeDtypeStruct((b_pad, encoding_dim), jnp.float32),   # logvar
    )
    out_specs = (
        tiled((tb, encoding_dim)),
        tiled((tb, genes_dim)),
        tiled((tb, encoding_dim)),
        tiled((tb, encoding_dim)),
    )

    flops = 2 * b_pad * (
        genes_dim * p_pad
        + p_pad * hidden
        + hidden * 2 * encoding_dim
        + encoding_dim * hidden
        + hidden * genes_dim
    )
    bytes_accessed = sum(int(a.size) * a.dtype.itemsize for a in inputs) + sum(
        math.prod(s.shape) * 4 for s in out_shapes
    )
    cost = pl.CostEstimate(
        flops=int(flops),
        transcendentals=int(b_pad * p_pad),
        bytes_accessed=int(bytes_accessed),
    )

    z, xhat, mean, logvar = pl.pallas_call(
        pavae_kernel,
        out_shape=out_shapes,
        grid=(nb,),
        in_specs=in_specs,
        out_specs=out_specs,
        compiler_params=pltpu.CompilerParams(
            dimension_semantics=("parallel",),
            vmem_limit_bytes=_vmem_limit_bytes(),
        ),
        cost_estimate=cost,
    )(*inputs)

    return z[:B], xhat[:B], mean[:B], logvar[:B]


# ----------------------------------------------------------------------------
# Deterministic parameter construction (synthetic; mirrors module __init__)
# ----------------------------------------------------------------------------
def build_params(key, *, genes_dim, pathway_sizes, hidden, encoding_dim):
    n_pathways = len(pathway_sizes)
    keys = jax.random.split(key, 4 + 2 * n_pathways)

    # pathway definitions: random gene index sets (no repeats within a pathway,
    # so the dense fold-in is exact).
    pathway_defs = []
    for j, psize in enumerate(pathway_sizes):
        perm = jax.random.permutation(keys[4 + 2 * j], genes_dim)
        pathway_defs.append(perm[:psize])

    # pathway encoders: Linear(psize, 1) each, folded into dense (genes, P)
    wp = jnp.zeros((genes_dim, n_pathways), jnp.float32)
    bp = jnp.zeros((1, n_pathways), jnp.float32)
    for j, (idx, psize) in enumerate(zip(pathway_defs, pathway_sizes)):
        w_j = 0.05 * jax.random.normal(keys[5 + 2 * j], (psize,), jnp.float32)
        wp = wp.at[idx, j].set(w_j)
        bp = bp.at[0, j].set(0.01 * (j + 1))

    def linear(k, fan_in, fan_out):
        kw, kb = jax.random.split(k)
        w = jax.random.normal(kw, (fan_in, fan_out), jnp.float32) / jnp.sqrt(fan_in)
        b = 0.01 * jax.random.normal(kb, (1, fan_out), jnp.float32)
        return w, b

    we1, be1 = linear(keys[0], n_pathways, hidden)
    we2, be2 = linear(keys[1], hidden, 2 * encoding_dim)
    wd1, bd1 = linear(keys[2], encoding_dim, hidden)
    wd2, bd2 = linear(keys[3], hidden, genes_dim)

    return (wp, bp, we1, be1, we2, be2, wd1, bd1, wd2, bd2)


def reference_forward(x, eps, params, encoding_dim):
    """Pure-JAX reference mirroring the kernel's bf16-operand / f32-accum math."""
    (wp, bp, we1, be1, we2, be2, wd1, bd1, wd2, bd2) = params
    bf = jnp.bfloat16
    f32 = jnp.float32
    xb = x.astype(bf)
    a = jnp.tanh(jnp.dot(xb, wp.astype(bf), preferred_element_type=f32) + bp)
    h1 = jax.nn.relu(
        jnp.dot(a.astype(bf), we1.astype(bf), preferred_element_type=f32) + be1
    )
    ml = jnp.dot(h1.astype(bf), we2.astype(bf), preferred_element_type=f32) + be2
    mean, logvar = ml[:, :encoding_dim], ml[:, encoding_dim:]
    z = mean + eps * logvar
    h2 = jax.nn.relu(
        jnp.dot(z.astype(bf), wd1.astype(bf), preferred_element_type=f32) + bd1
    )
    xhat = jnp.dot(h2.astype(bf), wd2.astype(bf), preferred_element_type=f32) + bd2
    return z, xhat, mean, logvar


if __name__ == "__main__":
    B = 200                              # not a multiple of the batch tile -> exercises padding
    genes_dim = 256
    pathway_sizes = [32] * 16            # 16 pathways -> padded to 128 lanes internally
    hidden = 128
    encoding_dim = 64                    # mean/logvar heads are 64 each

    root = jax.random.PRNGKey(0)
    k_param, k_x, k_eps = jax.random.split(root, 3)

    params = build_params(
        k_param,
        genes_dim=genes_dim,
        pathway_sizes=pathway_sizes,
        hidden=hidden,
        encoding_dim=encoding_dim,
    )
    x = jax.random.normal(k_x, (B, genes_dim), jnp.float32)
    eps = jax.random.normal(k_eps, (B, encoding_dim), jnp.float32)  # randn_like(mean)

    z, xhat, mean, logvar = pavae_forward(
        x, eps, params, encoding_dim=encoding_dim, batch_tile=128
    )
    jax.block_until_ready((z, xhat, mean, logvar))

    # correctness check against a pure-JAX reference of the same math
    z_r, xhat_r, mean_r, logvar_r = reference_forward(x, eps, params, encoding_dim)
    for name, got, want in (
        ("z", z, z_r),
        ("xhat", xhat, xhat_r),
        ("mean", mean, mean_r),
        ("logvar", logvar, logvar_r),
    ):
        if not jnp.allclose(got, want, atol=1e-2, rtol=1e-2):
            raise AssertionError(f"Pallas output mismatch vs reference: {name}")

    print("KERNEL_OK")
</pallas_src>

<mosaic_0001>
module attributes {stable_mosaic.version = 11 : i64} {
  func.func @pavae_kernel(%arg0: i32, %arg1: memref<128x256xbf16, #tpu.memory_space<vmem>>, %arg2: memref<128x64xf32, #tpu.memory_space<vmem>>, %arg3: memref<256x128xbf16, #tpu.memory_space<vmem>>, %arg4: memref<1x128xf32, #tpu.memory_space<vmem>>, %arg5: memref<128x128xbf16, #tpu.memory_space<vmem>>, %arg6: memref<1x128xf32, #tpu.memory_space<vmem>>, %arg7: memref<128x64xbf16, #tpu.memory_space<vmem>>, %arg8: memref<1x64xf32, #tpu.memory_space<vmem>>, %arg9: memref<128x64xbf16, #tpu.memory_space<vmem>>, %arg10: memref<1x64xf32, #tpu.memory_space<vmem>>, %arg11: memref<64x128xbf16, #tpu.memory_space<vmem>>, %arg12: memref<1x128xf32, #tpu.memory_space<vmem>>, %arg13: memref<128x256xbf16, #tpu.memory_space<vmem>>, %arg14: memref<1x256xf32, #tpu.memory_space<vmem>>, %arg15: memref<128x64xf32, #tpu.memory_space<vmem>>, %arg16: memref<128x256xf32, #tpu.memory_space<vmem>>, %arg17: memref<128x64xf32, #tpu.memory_space<vmem>>, %arg18: memref<128x64xf32, #tpu.memory_space<vmem>>) attributes {dimension_semantics = [#tpu.dimension_semantics<parallel>], iteration_bounds = array<i64: 2>, scalar_prefetch = 0 : i64, scratch_operands = 0 : i64, tpu.core_type = #tpu.core_type<tc>, window_params = [{transform_indices = @transform_0, window_bounds = array<i64: 128, 256>}, {transform_indices = @transform_1, window_bounds = array<i64: 128, 64>}, {pipeline_mode = #tpu.pipeline_mode<synchronous>, transform_indices = @transform_2, window_bounds = array<i64: 256, 128>}, {pipeline_mode = #tpu.pipeline_mode<synchronous>, transform_indices = @transform_3, window_bounds = array<i64: 1, 128>}, {pipeline_mode = #tpu.pipeline_mode<synchronous>, transform_indices = @transform_4, window_bounds = array<i64: 128, 128>}, {pipeline_mode = #tpu.pipeline_mode<synchronous>, transform_indices = @transform_5, window_bounds = array<i64: 1, 128>}, {pipeline_mode = #tpu.pipeline_mode<synchronous>, transform_indices = @transform_6, window_bounds = array<i64: 128, 64>}, {pipeline_mode = #tpu.pipeline_mode<synchronous>, transform_indices = @transform_7, window_bounds = array<i64: 1, 64>}, {pipeline_mode = #tpu.pipeline_mode<synchronous>, transform_indices = @transform_8, window_bounds = array<i64: 128, 64>}, {pipeline_mode = #tpu.pipeline_mode<synchronous>, transform_indices = @transform_9, window_bounds = array<i64: 1, 64>}, {pipeline_mode = #tpu.pipeline_mode<synchronous>, transform_indices = @transform_10, window_bounds = array<i64: 64, 128>}, {pipeline_mode = #tpu.pipeline_mode<synchronous>, transform_indices = @transform_11, window_bounds = array<i64: 1, 128>}, {pipeline_mode = #tpu.pipeline_mode<synchronous>, transform_indices = @transform_12, window_bounds = array<i64: 128, 256>}, {pipeline_mode = #tpu.pipeline_mode<synchronous>, transform_indices = @transform_13, window_bounds = array<i64: 1, 256>}, {transform_indices = @transform_14, window_bounds = array<i64: 128, 64>}, {transform_indices = @transform_15, window_bounds = array<i64: 128, 256>}, {transform_indices = @transform_16, window_bounds = array<i64: 128, 64>}, {transform_indices = @transform_17, window_bounds = array<i64: 128, 64>}]} {
    %c0 = arith.constant 0 : index
    %c0_0 = arith.constant 0 : index
    %0 = vector.load %arg1[%c0, %c0_0] : memref<128x256xbf16, #tpu.memory_space<vmem>>, vector<128x256xbf16>
    %c0_1 = arith.constant 0 : index
    %c0_2 = arith.constant 0 : index
    %1 = vector.load %arg3[%c0_1, %c0_2] : memref<256x128xbf16, #tpu.memory_space<vmem>>, vector<256x128xbf16>
    %cst = arith.constant dense<0.000000e+00> : vector<128x128xf32>
    %2 = tpu.matmul %0, %1, %cst {dimension_numbers = #tpu.dot_dimension_numbers<[1], [0], [0], [1], [0, 0, 1, 1], [], []>} : vector<128x256xbf16>, vector<256x128xbf16>, vector<128x128xf32> -> vector<128x128xf32>
    %c0_3 = arith.constant 0 : index
    %c0_4 = arith.constant 0 : index
    %3 = vector.load %arg4[%c0_3, %c0_4] : memref<1x128xf32, #tpu.memory_space<vmem>>, vector<1x128xf32>
    %4 = vector.broadcast %3 : vector<1x128xf32> to vector<128x128xf32>
    %5 = arith.addf %2, %4 : vector<128x128xf32>
    %6 = math.tanh %5 : vector<128x128xf32>
    %7 = arith.truncf %6 : vector<128x128xf32> to vector<128x128xbf16>
    %c0_5 = arith.constant 0 : index
    %c0_6 = arith.constant 0 : index
    %8 = vector.load %arg5[%c0_5, %c0_6] : memref<128x128xbf16, #tpu.memory_space<vmem>>, vector<128x128xbf16>
    %cst_7 = arith.constant dense<0.000000e+00> : vector<128x128xf32>
    %9 = tpu.matmul %7, %8, %cst_7 {dimension_numbers = #tpu.dot_dimension_numbers<[1], [0], [0], [1], [0, 0, 1, 1], [], []>} : vector<128x128xbf16>, vector<128x128xbf16>, vector<128x128xf32> -> vector<128x128xf32>
    %c0_8 = arith.constant 0 : index
    %c0_9 = arith.constant 0 : index
    %10 = vector.load %arg6[%c0_8, %c0_9] : memref<1x128xf32, #tpu.memory_space<vmem>>, vector<1x128xf32>
    %11 = vector.broadcast %10 : vector<1x128xf32> to vector<128x128xf32>
    %12 = arith.addf %9, %11 : vector<128x128xf32>
    %cst_10 = arith.constant 0.000000e+00 : f32
    %13 = vector.broadcast %cst_10 : f32 to vector<128x128xf32>
    %14 = arith.maximumf %12, %13 : vector<128x128xf32>
    %15 = arith.truncf %14 : vector<128x128xf32> to vector<128x128xbf16>
    %c0_11 = arith.constant 0 : index
    %c0_12 = arith.constant 0 : index
    %16 = vector.load %arg7[%c0_11, %c0_12] : memref<128x64xbf16, #tpu.memory_space<vmem>>, vector<128x64xbf16>
    %cst_13 = arith.constant dense<0.000000e+00> : vector<128x64xf32>
    %17 = tpu.matmul %15, %16, %cst_13 {dimension_numbers = #tpu.dot_dimension_numbers<[1], [0], [0], [1], [0, 0, 1, 1], [], []>} : vector<128x128xbf16>, vector<128x64xbf16>, vector<128x64xf32> -> vector<128x64xf32>
    %c0_14 = arith.constant 0 : index
    %c0_15 = arith.constant 0 : index
    %18 = vector.load %arg8[%c0_14, %c0_15] : memref<1x64xf32, #tpu.memory_space<vmem>>, vector<1x64xf32>
    %19 = vector.broadcast %18 : vector<1x64xf32> to vector<128x64xf32>
    %20 = arith.addf %17, %19 : vector<128x64xf32>
    %c0_16 = arith.constant 0 : index
    %c0_17 = arith.constant 0 : index
    %21 = vector.load %arg9[%c0_16, %c0_17] : memref<128x64xbf16, #tpu.memory_space<vmem>>, vector<128x64xbf16>
    %cst_18 = arith.constant dense<0.000000e+00> : vector<128x64xf32>
    %22 = tpu.matmul %15, %21, %cst_18 {dimension_numbers = #tpu.dot_dimension_numbers<[1], [0], [0], [1], [0, 0, 1, 1], [], []>} : vector<128x128xbf16>, vector<128x64xbf16>, vector<128x64xf32> -> vector<128x64xf32>
    %c0_19 = arith.constant 0 : index
    %c0_20 = arith.constant 0 : index
    %23 = vector.load %arg10[%c0_19, %c0_20] : memref<1x64xf32, #tpu.memory_space<vmem>>, vector<1x64xf32>
    %24 = vector.broadcast %23 : vector<1x64xf32> to vector<128x64xf32>
    %25 = arith.addf %22, %24 : vector<128x64xf32>
    %c0_21 = arith.constant 0 : index
    %c0_22 = arith.constant 0 : index
    %26 = vector.load %arg2[%c0_21, %c0_22] : memref<128x64xf32, #tpu.memory_space<vmem>>, vector<128x64xf32>
    %27 = arith.mulf %26, %25 : vector<128x64xf32>
    %28 = arith.addf %20, %27 : vector<128x64xf32>
    %29 = arith.truncf %28 : vector<128x64xf32> to vector<128x64xbf16>
    %c0_23 = arith.constant 0 : index
    %c0_24 = arith.constant 0 : index
    %30 = vector.load %arg11[%c0_23, %c0_24] : memref<64x128xbf16, #tpu.memory_space<vmem>>, vector<64x128xbf16>
    %cst_25 = arith.constant dense<0.000000e+00> : vector<128x128xf32>
    %31 = tpu.matmul %29, %30, %cst_25 {dimension_numbers = #tpu.dot_dimension_numbers<[1], [0], [0], [1], [0, 0, 1, 1], [], []>} : vector<128x64xbf16>, vector<64x128xbf16>, vector<128x128xf32> -> vector<128x128xf32>
    %c0_26 = arith.constant 0 : index
    %c0_27 = arith.constant 0 : index
    %32 = vector.load %arg12[%c0_26, %c0_27] : memref<1x128xf32, #tpu.memory_space<vmem>>, vector<1x128xf32>
    %33 = vector.broadcast %32 : vector<1x128xf32> to vector<128x128xf32>
    %34 = arith.addf %31, %33 : vector<128x128xf32>
    %cst_28 = arith.constant 0.000000e+00 : f32
    %35 = vector.broadcast %cst_28 : f32 to vector<128x128xf32>
    %36 = arith.maximumf %34, %35 : vector<128x128xf32>
    %37 = arith.truncf %36 : vector<128x128xf32> to vector<128x128xbf16>
    %c0_29 = arith.constant 0 : index
    %c0_30 = arith.constant 0 : index
    %38 = vector.load %arg13[%c0_29, %c0_30] : memref<128x256xbf16, #tpu.memory_space<vmem>>, vector<128x256xbf16>
    %cst_31 = arith.constant dense<0.000000e+00> : vector<128x256xf32>
    %39 = tpu.matmul %37, %38, %cst_31 {dimension_numbers = #tpu.dot_dimension_numbers<[1], [0], [0], [1], [0, 0, 1, 1], [], []>} : vector<128x128xbf16>, vector<128x256xbf16>, vector<128x256xf32> -> vector<128x256xf32>
    %c0_32 = arith.constant 0 : index
    %c0_33 = arith.constant 0 : index
    %40 = vector.load %arg14[%c0_32, %c0_33] : memref<1x256xf32, #tpu.memory_space<vmem>>, vector<1x256xf32>
    %41 = vector.broadcast %40 : vector<1x256xf32> to vector<128x256xf32>
    %42 = arith.addf %39, %41 : vector<128x256xf32>
    %c0_34 = arith.constant 0 : index
    %c0_35 = arith.constant 0 : index
    %43 = vector.load %arg15[%c0_34, %c0_35] : memref<128x64xf32, #tpu.memory_space<vmem>>, vector<128x64xf32>
    tpu.vector_store %arg15[%c0_34, %c0_35], %28 {strides = array<i32>} : memref<128x64xf32, #tpu.memory_space<vmem>>, vector<128x64xf32>,
    %c0_36 = arith.constant 0 : index
    %c0_37 = arith.constant 0 : index
    %44 = vector.load %arg16[%c0_36, %c0_37] : memref<128x256xf32, #tpu.memory_space<vmem>>, vector<128x256xf32>
    tpu.vector_store %arg16[%c0_36, %c0_37], %42 {strides = array<i32>} : memref<128x256xf32, #tpu.memory_space<vmem>>, vector<128x256xf32>,
    %c0_38 = arith.constant 0 : index
    %c0_39 = arith.constant 0 : index
    %45 = vector.load %arg17[%c0_38, %c0_39] : memref<128x64xf32, #tpu.memory_space<vmem>>, vector<128x64xf32>
    tpu.vector_store %arg17[%c0_38, %c0_39], %20 {strides = array<i32>} : memref<128x64xf32, #tpu.memory_space<vmem>>, vector<128x64xf32>,
    %c0_40 = arith.constant 0 : index
    %c0_41 = arith.constant 0 : index
    %46 = vector.load %arg18[%c0_40, %c0_41] : memref<128x64xf32, #tpu.memory_space<vmem>>, vector<128x64xf32>
    tpu.vector_store %arg18[%c0_40, %c0_41], %25 {strides = array<i32>} : memref<128x64xf32, #tpu.memory_space<vmem>>, vector<128x64xf32>,
    return
  }
  func.func @transform_0(%arg0: i32) -> (i32, i32) {
    %c0_i32 = arith.constant 0 : i32
    %c0_i32_0 = arith.constant 0 : i32
    return %arg0, %c0_i32 : i32, i32
  }
  func.func @transform_1(%arg0: i32) -> (i32, i32) {
    %c0_i32 = arith.constant 0 : i32
    %c0_i32_0 = arith.constant 0 : i32
    return %arg0, %c0_i32 : i32, i32
  }
  func.func @transform_2(%arg0: i32) -> (i32, i32) {
    %c0_i32 = arith.constant 0 : i32
    %c0_i32_0 = arith.constant 0 : i32
    %c0_i32_1 = arith.constant 0 : i32
    return %c0_i32, %c0_i32_0 : i32, i32
  }
  func.func @transform_3(%arg0: i32) -> (i32, i32) {
    %c0_i32 = arith.constant 0 : i32
    %c0_i32_0 = arith.constant 0 : i32
    %c0_i32_1 = arith.constant 0 : i32
    return %c0_i32, %c0_i32_0 : i32, i32
  }
  func.func @transform_4(%arg0: i32) -> (i32, i32) {
    %c0_i32 = arith.constant 0 : i32
    %c0_i32_0 = arith.constant 0 : i32
    %c0_i32_1 = arith.constant 0 : i32
    return %c0_i32, %c0_i32_0 : i32, i32
  }
  func.func @transform_5(%arg0: i32) -> (i32, i32) {
    %c0_i32 = arith.constant 0 : i32
    %c0_i32_0 = arith.constant 0 : i32
    %c0_i32_1 = arith.constant 0 : i32
    return %c0_i32, %c0_i32_0 : i32, i32
  }
  func.func @transform_6(%arg0: i32) -> (i32, i32) {
    %c0_i32 = arith.constant 0 : i32
    %c0_i32_0 = arith.constant 0 : i32
    %c0_i32_1 = arith.constant 0 : i32
    return %c0_i32, %c0_i32_0 : i32, i32
  }
  func.func @transform_7(%arg0: i32) -> (i32, i32) {
    %c0_i32 = arith.constant 0 : i32
    %c0_i32_0 = arith.constant 0 : i32
    %c0_i32_1 = arith.constant 0 : i32
    return %c0_i32, %c0_i32_0 : i32, i32
  }
  func.func @transform_8(%arg0: i32) -> (i32, i32) {
    %c0_i32 = arith.constant 0 : i32
    %c0_i32_0 = arith.constant 0 : i32
    %c0_i32_1 = arith.constant 0 : i32
    return %c0_i32, %c0_i32_0 : i32, i32
  }
  func.func @transform_9(%arg0: i32) -> (i32, i32) {
    %c0_i32 = arith.constant 0 : i32
    %c0_i32_0 = arith.constant 0 : i32
    %c0_i32_1 = arith.constant 0 : i32
    return %c0_i32, %c0_i32_0 : i32, i32
  }
  func.func @transform_10(%arg0: i32) -> (i32, i32) {
    %c0_i32 = arith.constant 0 : i32
    %c0_i32_0 = arith.constant 0 : i32
    %c0_i32_1 = arith.constant 0 : i32
    return %c0_i32, %c0_i32_0 : i32, i32
  }
  func.func @transform_11(%arg0: i32) -> (i32, i32) {
    %c0_i32 = arith.constant 0 : i32
    %c0_i32_0 = arith.constant 0 : i32
    %c0_i32_1 = arith.constant 0 : i32
    return %c0_i32, %c0_i32_0 : i32, i32
  }
  func.func @transform_12(%arg0: i32) -> (i32, i32) {
    %c0_i32 = arith.constant 0 : i32
    %c0_i32_0 = arith.constant 0 : i32
    %c0_i32_1 = arith.constant 0 : i32
    return %c0_i32, %c0_i32_0 : i32, i32
  }
  func.func @transform_13(%arg0: i32) -> (i32, i32) {
    %c0_i32 = arith.constant 0 : i32
    %c0_i32_0 = arith.constant 0 : i32
    %c0_i32_1 = arith.constant 0 : i32
    return %c0_i32, %c0_i32_0 : i32, i32
  }
  func.func @transform_14(%arg0: i32) -> (i32, i32) {
    %c0_i32 = arith.constant 0 : i32
    %c0_i32_0 = arith.constant 0 : i32
    return %arg0, %c0_i32 : i32, i32
  }
  func.func @transform_15(%arg0: i32) -> (i32, i32) {
    %c0_i32 = arith.constant 0 : i32
    %c0_i32_0 = arith.constant 0 : i32
    return %arg0, %c0_i32 : i32, i32
  }
  func.func @transform_16(%arg0: i32) -> (i32, i32) {
    %c0_i32 = arith.constant 0 : i32
    %c0_i32_0 = arith.constant 0 : i32
    return %arg0, %c0_i32 : i32, i32
  }
  func.func @transform_17(%arg0: i32) -> (i32, i32) {
    %c0_i32 = arith.constant 0 : i32
    %c0_i32_0 = arith.constant 0 : i32
    return %arg0, %c0_i32 : i32, i32
  }
}

</mosaic_0001>

<llo_original>
// kernel: pavae_forward.1
$region0: #{pavae_forward.1}
  #allocation0 [shape = 'u32[]', space=smem, size = 0x4, offset = 0x4, fixed_abs, tag = 'smem constant byte address 0x4 - core index']
  #allocation1 [shape = 'u32[144,128]{1,0:T(1,128)}', space=vmem, size = 0x12000, scoped, tag = 'internal scratch']
  %s0 = inlined_call_operand.hbm [shape: bf16[256,256], index: 0, kind: input, shape index: {}]
  %s1 = inlined_call_operand.hbm [shape: f32[256,64], index: 1, kind: input, shape index: {}]
  %s2 = inlined_call_operand.hbm [shape: bf16[256,128], index: 2, kind: input, shape index: {}]
  %s3 = inlined_call_operand.hbm [shape: f32[1,128], index: 3, kind: input, shape index: {}]
  %s4 = inlined_call_operand.hbm [shape: bf16[128,128], index: 4, kind: input, shape index: {}]
  %s5 = inlined_call_operand.hbm [shape: f32[1,128], index: 5, kind: input, shape index: {}]
  %s6 = inlined_call_operand.hbm [shape: bf16[128,64], index: 6, kind: input, shape index: {}]
  %s7 = inlined_call_operand.hbm [shape: f32[1,64], index: 7, kind: input, shape index: {}]
  %s8 = inlined_call_operand.hbm [shape: bf16[128,64], index: 8, kind: input, shape index: {}]
  %s9 = inlined_call_operand.hbm [shape: f32[1,64], index: 9, kind: input, shape index: {}]
  %s10 = inlined_call_operand.hbm [shape: bf16[64,128], index: 10, kind: input, shape index: {}]
  %s11 = inlined_call_operand.hbm [shape: f32[1,128], index: 11, kind: input, shape index: {}]
  %s12 = inlined_call_operand.hbm [shape: bf16[128,256], index: 12, kind: input, shape index: {}]
  %s13 = inlined_call_operand.hbm [shape: f32[1,256], index: 13, kind: input, shape index: {}]
  %s14 = inlined_call_operand.hbm [shape: f32[256,64], index: 14, kind: output, shape index: {0}]
  %s15 = inlined_call_operand.hbm [shape: f32[256,256], index: 15, kind: output, shape index: {1}]
  %s16 = inlined_call_operand.hbm [shape: f32[256,64], index: 16, kind: output, shape index: {2}]
  %s17 = inlined_call_operand.hbm [shape: f32[256,64], index: 17, kind: output, shape index: {3}]
  %18 = xla_tuple %s14, %s15, %s16, %s17
  %s19 = sld [smem:[#allocation0]]
  $region169: #{pavae_forward.1} parent=0
    _
  %s21 = ssub.s32 1, %s19
  %s22 = scalar_select 0, %s21, %s19
  $region1: #{pavae_forward.1} parent=0
    #allocation2 [shape = 'u8[131072]{0}', space=vmem, size = 0x20000, scoped, tag = 'input window, operand 0']
    #allocation3 [shape = 's32[2]{0}', space=sflag, size = 0x8, scoped, tag = 'scoped memory for pavae_forward.1']
    #allocation4 [shape = 's32[2]{0}', space=sflag, size = 0x8, scoped, tag = 'scoped memory for pavae_forward.1']
    #allocation5 [shape = 'u8[131072]{0}', space=vmem, size = 0x20000, scoped, tag = 'input window, operand 1']
    #allocation6 [shape = 's32[2]{0}', space=sflag, size = 0x8, scoped, tag = 'scoped memory for pavae_forward.1']
    #allocation7 [shape = 'u8[65536]{0}', space=vmem, size = 0x10000, scoped, tag = 'input window, operand 2, single buffered']
    #allocation8 [shape = 'u8[512]{0}', space=vmem, size = 0x400, scoped, tag = 'input window, operand 3, single buffered']
    #allocation9 [shape = 's32[1]{0}', space=sflag, size = 0x4, scoped, tag = 'scoped memory for pavae_forward.1']
    #allocation10 [shape = 'u8[32768]{0}', space=vmem, size = 0x8000, scoped, tag = 'input window, operand 4, single buffered']
    #allocation11 [shape = 'u8[512]{0}', space=vmem, size = 0x400, scoped, tag = 'input window, operand 5, single buffered']
    #allocation12 [shape = 's32[1]{0}', space=sflag, size = 0x4, scoped, tag = 'scoped memory for pavae_forward.1']
    #allocation13 [shape = 'u8[32768]{0}', space=vmem, size = 0x8000, scoped, tag = 'input window, operand 6, single buffered']
    #allocation14 [shape = 'u8[512]{0}', space=vmem, size = 0x400, scoped, tag = 'input window, operand 7, single buffered']
    #allocation15 [shape = 's32[1]{0}', space=sflag, size = 0x4, scoped, tag = 'scoped memory for pavae_forward.1']
    #allocation16 [shape = 'u8[32768]{0}', space=vmem, size = 0x8000, scoped, tag = 'input window, operand 8, single buffered']
    #allocation17 [shape = 'u8[512]{0}', space=vmem, size = 0x400, scoped, tag = 'input window, operand 9, single buffered']
    #allocation18 [shape = 's32[1]{0}', space=sflag, size = 0x4, scoped, tag = 'scoped memory for pavae_forward.1']
    #allocation19 [shape = 'u8[16384]{0}', space=vmem, size = 0x4000, scoped, tag = 'input window, operand 10, single buffered']
    #allocation20 [shape = 'u8[512]{0}', space=vmem, size = 0x400, scoped, tag = 'input window, operand 11, single buffered']
    #allocation21 [shape = 's32[1]{0}', space=sflag, size = 0x4, scoped, tag = 'scoped memory for pavae_forward.1']
    #allocation22 [shape = 'u8[65536]{0}', space=vmem, size = 0x10000, scoped, tag = 'input window, operand 12, single buffered']
    #allocation23 [shape = 'u8[1024]{0}', space=vmem, size = 0x400, scoped, tag = 'input window, operand 13, single buffered']
    #allocation24 [shape = 's32[1]{0}', space=sflag, size = 0x4, scoped, tag = 'scoped memory for pavae_forward.1']
    #allocation25 [shape = 'u8[131072]{0}', space=vmem, size = 0x20000, scoped, tag = 'output window, operand 0']
    #allocation26 [shape = 'u8[262144]{0}', space=vmem, size = 0x40000, scoped, tag = 'output window, operand 1']
    #allocation27 [shape = 's32[2]{0}', space=sflag, size = 0x8, scoped, tag = 'scoped memory for pavae_forward.1']
    #allocation28 [shape = 'u8[131072]{0}', space=vmem, size = 0x20000, scoped, tag = 'output window, operand 2']
    #allocation29 [shape = 'u8[131072]{0}', space=vmem, size = 0x20000, scoped, tag = 'output window, operand 3']
    #allocation30 [shape = 's32[2]{0}', space=sflag, size = 0x8, scoped, tag = 'scoped memory for pavae_forward.1']
    %23 = vsyncpa [#allocation3], 0
    %s24 = scalar_lea.sflag [#allocation3], 1
    %25 = vsyncpa %s24, 0
    %26 = vsyncpa [#allocation6], 0
    %s27 = scalar_lea.sflag [#allocation6], 1
    %28 = vsyncpa %s27, 0
    %29 = vsyncpa [#allocation9], 0
    %30 = vsyncpa [#allocation12], 0
    %31 = vsyncpa [#allocation15], 0
    %32 = vsyncpa [#allocation18], 0
    %33 = vsyncpa [#allocation21], 0
    %34 = vsyncpa [#allocation24], 0
    %35 = vsyncpa [#allocation4], 0
    %s36 = scalar_lea.sflag [#allocation4], 1
    %37 = vsyncpa %s36, 0
    %38 = vsyncpa [#allocation27], 0
    %s39 = scalar_lea.sflag [#allocation27], 1
    %40 = vsyncpa %s39, 0
    %41 = vsyncpa [#allocation30], 0
    %s42 = scalar_lea.sflag [#allocation30], 1
    %43 = vsyncpa %s42, 0
    loop: start=0, step=1, limit=4
    $region2: #{pavae_forward.1} parent=1 // loop_pre_header
      _
    $region3: #{pavae_forward.1} parent=1 // loop_header
      %s45 = sphi 0, %s49
      %p46 = scmp.ge.s32.totalorder %s45, 4
      %s55 = sphi 0, %s57
      %s58 = sphi 0, %s55
      %s59 = sphi 0, %s58
      %s75 = sphi 0, %s59
      %s81 = sphi 0, %s83
      %s84 = sphi 0, %s81
      %s85 = sphi 0, %s84
      %s101 = sphi 0, %s85
      %s105 = sphi 0, %s105
      %s107 = sphi 0, %s105
      %s108 = sphi 0, %s107
      %s122 = sphi 0, %s108
      %s126 = sphi 0, %s126
      %s128 = sphi 0, %s126
      %s129 = sphi 0, %s128
      %s143 = sphi 0, %s129
      %s147 = sphi 0, %s147
      %s149 = sphi 0, %s147
      %s150 = sphi 0, %s149
      %s164 = sphi 0, %s150
      %s168 = sphi 0, %s168
      %s170 = sphi 0, %s168
      %s171 = sphi 0, %s170
      %s185 = sphi 0, %s171
      %s189 = sphi 0, %s189
      %s191 = sphi 0, %s189
      %s192 = sphi 0, %s191
      %s206 = sphi 0, %s192
      %s210 = sphi 0, %s210
      %s212 = sphi 0, %s210
      %s213 = sphi 0, %s212
      %s227 = sphi 0, %s213
      %s231 = sphi 0, %s231
      %s233 = sphi 0, %s231
      %s234 = sphi 0, %s233
      %s248 = sphi 0, %s234
      %s252 = sphi 0, %s252
      %s254 = sphi 0, %s252
      %s255 = sphi 0, %s254
      %s269 = sphi 0, %s255
      %s273 = sphi 0, %s273
      %s275 = sphi 0, %s273
      %s276 = sphi 0, %s275
      %s290 = sphi 0, %s276
      %s294 = sphi 0, %s294
      %s296 = sphi 0, %s294
      %s297 = sphi 0, %s296
      %s311 = sphi 0, %s297
      %s315 = sphi 0, %s315
      %s317 = sphi 0, %s315
      %s318 = sphi 0, %s317
      %s332 = sphi 0, %s318
      %s336 = sphi 0, %s336
      %s338 = sphi 0, %s336
      %s339 = sphi 0, %s338
      %s353 = sphi 0, %s339
      %s359 = sphi 0, %s361
      %s362 = sphi 0, %s359
      %s363 = sphi 0, %s362
      %s379 = sphi 0, %s363
      %s385 = sphi 0, %s387
      %s388 = sphi 0, %s385
      %s389 = sphi 0, %s388
      %s405 = sphi 0, %s389
      %s411 = sphi 0, %s413
      %s414 = sphi 0, %s411
      %s415 = sphi 0, %s414
      %s431 = sphi 0, %s415
      %s437 = sphi 0, %s439
      %s440 = sphi 0, %s437
      %s441 = sphi 0, %s440
      %s457 = sphi 0, %s441
    $region4: #{pavae_forward.1} parent=1 // loop_header_branch
      %48 = sbr.rel (%p46) target = $region8
    $region5: #{pavae_forward.1} parent=1 // loop_body
      %s50 = ssub.s32 %s45, 1
      %s51 = ssub.s32 %s45, 2
      %s52 = sadd.s32 %s45, 1
      %s53 = ssub.s32 %s45, %s52
      %p54 = scmp.eq.s32.totalorder %s53, 0
      %s56 = sadd.s32 %s55, 1
      %s57 = scalar_select %p54, %s55, %s56
      %p60 = pneg %p54
      %p61 = scmp.eq.s32.totalorder %s45, 1
      %p62 = por %p60, %p61
      %p63 = scmp.ne.s32.totalorder %s55, %s58
      %p64 = scmp.eq.s32.totalorder %s45, 0
      %p65 = por %p63, %p64
      %p66 = scmp.ne.s32.totalorder %s55, %s58
      %p67 = scmp.eq.s32.totalorder %s50, 1
      %p68 = por %p66, %p67
      %p69 = scmp.ne.s32.totalorder %s58, %s59
      %p70 = scmp.eq.s32.totalorder %s50, 0
      %p71 = por %p69, %p70
      %p72 = scmp.ne.s32.totalorder %s58, %s59
      %p73 = scmp.eq.s32.totalorder %s51, 1
      %p74 = por %p72, %p73
      %p76 = scmp.ne.s32.totalorder %s59, %s75
      %p77 = scmp.eq.s32.totalorder %s51, 0
      %p78 = por %p76, %p77
      %s79 = ssub.s32 %s45, %s52
      %p80 = scmp.eq.s32.totalorder %s79, 0
      %s82 = sadd.s32 %s81, 1
      %s83 = scalar_select %p80, %s81, %s82
      %p86 = pneg %p80
      %p87 = scmp.eq.s32.totalorder %s45, 1
      %p88 = por %p86, %p87
      %p89 = scmp.ne.s32.totalorder %s81, %s84
      %p90 = scmp.eq.s32.totalorder %s45, 0
      %p91 = por %p89, %p90
      %p92 = scmp.ne.s32.totalorder %s81, %s84
      %p93 = scmp.eq.s32.totalorder %s50, 1
      %p94 = por %p92, %p93
      %p95 = scmp.ne.s32.totalorder %s84, %s85
      %p96 = scmp.eq.s32.totalorder %s50, 0
      %p97 = por %p95, %p96
      %p98 = scmp.ne.s32.totalorder %s84, %s85
      %p99 = scmp.eq.s32.totalorder %s51, 1
      %p100 = por %p98, %p99
      %p102 = scmp.ne.s32.totalorder %s85, %s101
      %p103 = scmp.eq.s32.totalorder %s51, 0
      %p104 = por %p102, %p103
      %s106 = sadd.s32 %s105, 1
      %p109 = scmp.eq.s32.totalorder %s45, 1
      %p110 = scmp.ne.s32.totalorder %s105, %s107
      %p111 = scmp.eq.s32.totalorder %s45, 0
      %p112 = por %p110, %p111
      %p113 = scmp.ne.s32.totalorder %s105, %s107
      %p114 = scmp.eq.s32.totalorder %s50, 1
      %p115 = por %p113, %p114
      %p116 = scmp.ne.s32.totalorder %s107, %s108
      %p117 = scmp.eq.s32.totalorder %s50, 0
      %p118 = por %p116, %p117
      %p119 = scmp.ne.s32.totalorder %s107, %s108
      %p120 = scmp.eq.s32.totalorder %s51, 1
      %p121 = por %p119, %p120
      %p123 = scmp.ne.s32.totalorder %s108, %s122
      %p124 = scmp.eq.s32.totalorder %s51, 0
      %p125 = por %p123, %p124
      %s127 = sadd.s32 %s126, 1
      %p130 = scmp.eq.s32.totalorder %s45, 1
      %p131 = scmp.ne.s32.totalorder %s126, %s128
      %p132 = scmp.eq.s32.totalorder %s45, 0
      %p133 = por %p131, %p132
      %p134 = scmp.ne.s32.totalorder %s126, %s128
      %p135 = scmp.eq.s32.totalorder %s50, 1
      %p136 = por %p134, %p135
      %p137 = scmp.ne.s32.totalorder %s128, %s129
      %p138 = scmp.eq.s32.totalorder %s50, 0
      %p139 = por %p137, %p138
      %p140 = scmp.ne.s32.totalorder %s128, %s129
      %p141 = scmp.eq.s32.totalorder %s51, 1
      %p142 = por %p140, %p141
      %p144 = scmp.ne.s32.totalorder %s129, %s143
      %p145 = scmp.eq.s32.totalorder %s51, 0
      %p146 = por %p144, %p145
      %s148 = sadd.s32 %s147, 1
      %p151 = scmp.eq.s32.totalorder %s45, 1
      %p152 = scmp.ne.s32.totalorder %s147, %s149
      %p153 = scmp.eq.s32.totalorder %s45, 0
      %p154 = por %p152, %p153
      %p155 = scmp.ne.s32.totalorder %s147, %s149
      %p156 = scmp.eq.s32.totalorder %s50, 1
      %p157 = por %p155, %p156
      %p158 = scmp.ne.s32.totalorder %s149, %s150
      %p159 = scmp.eq.s32.totalorder %s50, 0
      %p160 = por %p158, %p159
      %p161 = scmp.ne.s32.totalorder %s149, %s150
      %p162 = scmp.eq.s32.totalorder %s51, 1
      %p163 = por %p161, %p162
      %p165 = scmp.ne.s32.totalorder %s150, %s164
      %p166 = scmp.eq.s32.totalorder %s51, 0
      %p167 = por %p165, %p166
      %s169 = sadd.s32 %s168, 1
      %p172 = scmp.eq.s32.totalorder %s45, 1
      %p173 = scmp.ne.s32.totalorder %s168, %s170
      %p174 = scmp.eq.s32.totalorder %s45, 0
      %p175 = por %p173, %p174
      %p176 = scmp.ne.s32.totalorder %s168, %s170
      %p177 = scmp.eq.s32.totalorder %s50, 1
      %p178 = por %p176, %p177
      %p179 = scmp.ne.s32.totalorder %s170, %s171
      %p180 = scmp.eq.s32.totalorder %s50, 0
      %p181 = por %p179, %p180
      %p182 = scmp.ne.s32.totalorder %s170, %s171
      %p183 = scmp.eq.s32.totalorder %s51, 1
      %p184 = por %p182, %p183
      %p186 = scmp.ne.s32.totalorder %s171, %s185
      %p187 = scmp.eq.s32.totalorder %s51, 0
      %p188 = por %p186, %p187
      %s190 = sadd.s32 %s189, 1
      %p193 = scmp.eq.s32.totalorder %s45, 1
      %p194 = scmp.ne.s32.totalorder %s189, %s191
      %p195 = scmp.eq.s32.totalorder %s45, 0
      %p196 = por %p194, %p195
      %p197 = scmp.ne.s32.totalorder %s189, %s191
      %p198 = scmp.eq.s32.totalorder %s50, 1
      %p199 = por %p197, %p198
      %p200 = scmp.ne.s32.totalorder %s191, %s192
      %p201 = scmp.eq.s32.totalorder %s50, 0
      %p202 = por %p200, %p201
      %p203 = scmp.ne.s32.totalorder %s191, %s192
      %p204 = scmp.eq.s32.totalorder %s51, 1
      %p205 = por %p203, %p204
      %p207 = scmp.ne.s32.totalorder %s192, %s206
      %p208 = scmp.eq.s32.totalorder %s51, 0
      %p209 = por %p207, %p208
      %s211 = sadd.s32 %s210, 1
      %p214 = scmp.eq.s32.totalorder %s45, 1
      %p215 = scmp.ne.s32.totalorder %s210, %s212
      %p216 = scmp.eq.s32.totalorder %s45, 0
      %p217 = por %p215, %p216
      %p218 = scmp.ne.s32.totalorder %s210, %s212
      %p219 = scmp.eq.s32.totalorder %s50, 1
      %p220 = por %p218, %p219
      %p221 = scmp.ne.s32.totalorder %s212, %s213
      %p222 = scmp.eq.s32.totalorder %s50, 0
      %p223 = por %p221, %p222
      %p224 = scmp.ne.s32.totalorder %s212, %s213
      %p225 = scmp.eq.s32.totalorder %s51, 1
      %p226 = por %p224, %p225
      %p228 = scmp.ne.s32.totalorder %s213, %s227
      %p229 = scmp.eq.s32.totalorder %s51, 0
      %p230 = por %p228, %p229
      %s232 = sadd.s32 %s231, 1
      %p235 = scmp.eq.s32.totalorder %s45, 1
      %p236 = scmp.ne.s32.totalorder %s231, %s233
      %p237 = scmp.eq.s32.totalorder %s45, 0
      %p238 = por %p236, %p237
      %p239 = scmp.ne.s32.totalorder %s231, %s233
      %p240 = scmp.eq.s32.totalorder %s50, 1
      %p241 = por %p239, %p240
      %p242 = scmp.ne.s32.totalorder %s233, %s234
      %p243 = scmp.eq.s32.totalorder %s50, 0
      %p244 = por %p242, %p243
      %p245 = scmp.ne.s32.totalorder %s233, %s234
      %p246 = scmp.eq.s32.totalorder %s51, 1
      %p247 = por %p245, %p246
      %p249 = scmp.ne.s32.totalorder %s234, %s248
      %p250 = scmp.eq.s32.totalorder %s51, 0
      %p251 = por %p249, %p250
      %s253 = sadd.s32 %s252, 1
      %p256 = scmp.eq.s32.totalorder %s45, 1
      %p257 = scmp.ne.s32.totalorder %s252, %s254
      %p258 = scmp.eq.s32.totalorder %s45, 0
      %p259 = por %p257, %p258
      %p260 = scmp.ne.s32.totalorder %s252, %s254
      %p261 = scmp.eq.s32.totalorder %s50, 1
      %p262 = por %p260, %p261
      %p263 = scmp.ne.s32.totalorder %s254, %s255
      %p264 = scmp.eq.s32.totalorder %s50, 0
      %p265 = por %p263, %p264
      %p266 = scmp.ne.s32.totalorder %s254, %s255
      %p267 = scmp.eq.s32.totalorder %s51, 1
      %p268 = por %p266, %p267
      %p270 = scmp.ne.s32.totalorder %s255, %s269
      %p271 = scmp.eq.s32.totalorder %s51, 0
      %p272 = por %p270, %p271
      %s274 = sadd.s32 %s273, 1
      %p277 = scmp.eq.s32.totalorder %s45, 1
      %p278 = scmp.ne.s32.totalorder %s273, %s275
      %p279 = scmp.eq.s32.totalorder %s45, 0
      %p280 = por %p278, %p279
      %p281 = scmp.ne.s32.totalorder %s273, %s275
      %p282 = scmp.eq.s32.totalorder %s50, 1
      %p283 = por %p281, %p282
      %p284 = scmp.ne.s32.totalorder %s275, %s276
      %p285 = scmp.eq.s32.totalorder %s50, 0
      %p286 = por %p284, %p285
      %p287 = scmp.ne.s32.totalorder %s275, %s276
      %p288 = scmp.eq.s32.totalorder %s51, 1
      %p289 = por %p287, %p288
      %p291 = scmp.ne.s32.totalorder %s276, %s290
      %p292 = scmp.eq.s32.totalorder %s51, 0
      %p293 = por %p291, %p292
      %s295 = sadd.s32 %s294, 1
      %p298 = scmp.eq.s32.totalorder %s45, 1
      %p299 = scmp.ne.s32.totalorder %s294, %s296
      %p300 = scmp.eq.s32.totalorder %s45, 0
      %p301 = por %p299, %p300
      %p302 = scmp.ne.s32.totalorder %s294, %s296
      %p303 = scmp.eq.s32.totalorder %s50, 1
      %p304 = por %p302, %p303
      %p305 = scmp.ne.s32.totalorder %s296, %s297
      %p306 = scmp.eq.s32.totalorder %s50, 0
      %p307 = por %p305, %p306
      %p308 = scmp.ne.s32.totalorder %s296, %s297
      %p309 = scmp.eq.s32.totalorder %s51, 1
      %p310 = por %p308, %p309
      %p312 = scmp.ne.s32.totalorder %s297, %s311
      %p313 = scmp.eq.s32.totalorder %s51, 0
      %p314 = por %p312, %p313
      %s316 = sadd.s32 %s315, 1
      %p319 = scmp.eq.s32.totalorder %s45, 1
      %p320 = scmp.ne.s32.totalorder %s315, %s317
      %p321 = scmp.eq.s32.totalorder %s45, 0
      %p322 = por %p320, %p321
      %p323 = scmp.ne.s32.totalorder %s315, %s317
      %p324 = scmp.eq.s32.totalorder %s50, 1
      %p325 = por %p323, %p324
      %p326 = scmp.ne.s32.totalorder %s317, %s318
      %p327 = scmp.eq.s32.totalorder %s50, 0
      %p328 = por %p326, %p327
      %p329 = scmp.ne.s32.totalorder %s317, %s318
      %p330 = scmp.eq.s32.totalorder %s51, 1
      %p331 = por %p329, %p330
      %p333 = scmp.ne.s32.totalorder %s318, %s332
      %p334 = scmp.eq.s32.totalorder %s51, 0
      %p335 = por %p333, %p334
      %s337 = sadd.s32 %s336, 1
      %p340 = scmp.eq.s32.totalorder %s45, 1
      %p341 = scmp.ne.s32.totalorder %s336, %s338
      %p342 = scmp.eq.s32.totalorder %s45, 0
      %p343 = por %p341, %p342
      %p344 = scmp.ne.s32.totalorder %s336, %s338
      %p345 = scmp.eq.s32.totalorder %s50, 1
      %p346 = por %p344, %p345
      %p347 = scmp.ne.s32.totalorder %s338, %s339
      %p348 = scmp.eq.s32.totalorder %s50, 0
      %p349 = por %p347, %p348
      %p350 = scmp.ne.s32.totalorder %s338, %s339
      %p351 = scmp.eq.s32.totalorder %s51, 1
      %p352 = por %p350, %p351
      %p354 = scmp.ne.s32.totalorder %s339, %s353
      %p355 = scmp.eq.s32.totalorder %s51, 0
      %p356 = por %p354, %p355
      %s357 = ssub.s32 %s45, %s52
      %p358 = scmp.eq.s32.totalorder %s357, 0
      %s360 = sadd.s32 %s359, 1
      %s361 = scalar_select %p358, %s359, %s360
      %p364 = pneg %p358
      %p365 = scmp.eq.s32.totalorder %s45, 1
      %p366 = por %p364, %p365
      %p367 = scmp.ne.s32.totalorder %s359, %s362
      %p368 = scmp.eq.s32.totalorder %s45, 0
      %p369 = por %p367, %p368
      %p370 = scmp.ne.s32.totalorder %s359, %s362
      %p371 = scmp.eq.s32.totalorder %s50, 1
      %p372 = por %p370, %p371
      %p373 = scmp.ne.s32.totalorder %s362, %s363
      %p374 = scmp.eq.s32.totalorder %s50, 0
      %p375 = por %p373, %p374
      %p376 = scmp.ne.s32.totalorder %s362, %s363
      %p377 = scmp.eq.s32.totalorder %s51, 1
      %p378 = por %p376, %p377
      %p380 = scmp.ne.s32.totalorder %s363, %s379
      %p381 = scmp.eq.s32.totalorder %s51, 0
      %p382 = por %p380, %p381
      %s383 = ssub.s32 %s45, %s52
      %p384 = scmp.eq.s32.totalorder %s383, 0
      %s386 = sadd.s32 %s385, 1
      %s387 = scalar_select %p384, %s385, %s386
      %p390 = pneg %p384
      %p391 = scmp.eq.s32.totalorder %s45, 1
      %p392 = por %p390, %p391
      %p393 = scmp.ne.s32.totalorder %s385, %s388
      %p394 = scmp.eq.s32.totalorder %s45, 0
      %p395 = por %p393, %p394
      %p396 = scmp.ne.s32.totalorder %s385, %s388
      %p397 = scmp.eq.s32.totalorder %s50, 1
      %p398 = por %p396, %p397
      %p399 = scmp.ne.s32.totalorder %s388, %s389
      %p400 = scmp.eq.s32.totalorder %s50, 0
      %p401 = por %p399, %p400
      %p402 = scmp.ne.s32.totalorder %s388, %s389
      %p403 = scmp.eq.s32.totalorder %s51, 1
      %p404 = por %p402, %p403
      %p406 = scmp.ne.s32.totalorder %s389, %s405
      %p407 = scmp.eq.s32.totalorder %s51, 0
      %p408 = por %p406, %p407
      %s409 = ssub.s32 %s45, %s52
      %p410 = scmp.eq.s32.totalorder %s409, 0
      %s412 = sadd.s32 %s411, 1
      %s413 = scalar_select %p410, %s411, %s412
      %p416 = pneg %p410
      %p417 = scmp.eq.s32.totalorder %s45, 1
      %p418 = por %p416, %p417
      %p419 = scmp.ne.s32.totalorder %s411, %s414
      %p420 = scmp.eq.s32.totalorder %s45, 0
      %p421 = por %p419, %p420
      %p422 = scmp.ne.s32.totalorder %s411, %s414
      %p423 = scmp.eq.s32.totalorder %s50, 1
      %p424 = por %p422, %p423
      %p425 = scmp.ne.s32.totalorder %s414, %s415
      %p426 = scmp.eq.s32.totalorder %s50, 0
      %p427 = por %p425, %p426
      %p428 = scmp.ne.s32.totalorder %s414, %s415
      %p429 = scmp.eq.s32.totalorder %s51, 1
      %p430 = por %p428, %p429
      %p432 = scmp.ne.s32.totalorder %s415, %s431
      %p433 = scmp.eq.s32.totalorder %s51, 0
      %p434 = por %p432, %p433
      %s435 = ssub.s32 %s45, %s52
      %p436 = scmp.eq.s32.totalorder %s435, 0
      %s438 = sadd.s32 %s437, 1
      %s439 = scalar_select %p436, %s437, %s438
      %p442 = pneg %p436
      %p443 = scmp.eq.s32.totalorder %s45, 1
      %p444 = por %p442, %p443
      %p445 = scmp.ne.s32.totalorder %s437, %s440
      %p446 = scmp.eq.s32.totalorder %s45, 0
      %p447 = por %p445, %p446
      %p448 = scmp.ne.s32.totalorder %s437, %s440
      %p449 = scmp.eq.s32.totalorder %s50, 1
      %p450 = por %p448, %p449
      %p451 = scmp.ne.s32.totalorder %s440, %s441
      %p452 = scmp.eq.s32.totalorder %s50, 0
      %p453 = por %p451, %p452
      %p454 = scmp.ne.s32.totalorder %s440, %s441
      %p455 = scmp.eq.s32.totalorder %s51, 1
      %p456 = por %p454, %p455
      %p458 = scmp.ne.s32.totalorder %s441, %s457
      %p459 = scmp.eq.s32.totalorder %s51, 0
      %p460 = por %p458, %p459
      %p461 = scmp.le.s32.totalorder 1, %s45
      %p462 = scmp.lt.s32.totalorder %s45, 3
      %p463 = pnand %p461, %p462
      %p464 = pneg %p463
      // Predicated region
      $region9: #{pavae_forward.1} parent=5 // pred_check
        _
      $region10: #{pavae_forward.1} parent=5 // pred_check_branch
        %466 = sbr.rel (%p463) target = $region12
      $region11: #{pavae_forward.1} parent=5 // pred_region
        %s467 = ssub.s32 %s45, 1
        // Predicated region
        $region13: #{pavae_forward.1} parent=11 // pred_check
          %p468 = pneg %p118
        $region14: #{pavae_forward.1} parent=11 // pred_check_branch
          %470 = sbr.rel (%p468) target = $region16
        $region15: #{pavae_forward.1} parent=11 // pred_region
          %s472 = ssub.s32 2048, 2048
          %473 = vsyncadd [#allocation6], %s472
          %s474 = sshll.u32 [#allocation7], 4
          %s475 = int_to_ptr.vmem [resolvable:$true] %s474
          %480 = dma.hbm_to_vmem [thread:$0]  %s2, 2048, %s475, [#allocation6], 64, 64, 4
        $region16: #{pavae_forward.1} parent=11 // pred_fallthru
          _
        // Predicated region
        $region17: #{pavae_forward.1} parent=11 // pred_check
          %p481 = pneg %p139
        $region18: #{pavae_forward.1} parent=11 // pred_check_branch
          %483 = sbr.rel (%p481) target = $region20
        $region19: #{pavae_forward.1} parent=11 // pred_region
          %s485 = ssub.s32 16, 16
          %486 = vsyncadd [#allocation9], %s485
          %s488 = sshll.u32 [#allocation8], 4
          %s489 = int_to_ptr.vmem [resolvable:$true] %s488
          %491 = dma.hbm_to_vmem [thread:$0]  %s3, 16, %s489, [#allocation9]
        $region20: #{pavae_forward.1} parent=11 // pred_fallthru
          _
        // Predicated region
        $region21: #{pavae_forward.1} parent=11 // pred_check
          %p492 = pneg %p160
        $region22: #{pavae_forward.1} parent=11 // pred_check_branch
          %494 = sbr.rel (%p492) target = $region24
        $region23: #{pavae_forward.1} parent=11 // pred_region
          %s496 = ssub.s32 1024, 1024
          %497 = vsyncadd [#allocation9], %s496
          %s498 = sshll.u32 [#allocation10], 4
          %s499 = int_to_ptr.vmem [resolvable:$true] %s498
          %504 = dma.hbm_to_vmem [thread:$0]  %s4, 1024, %s499, [#allocation9], 64, 64, 4
        $region24: #{pavae_forward.1} parent=11 // pred_fallthru
          _
        // Predicated region
        $region25: #{pavae_forward.1} parent=11 // pred_check
          %p505 = pneg %p181
        $region26: #{pavae_forward.1} parent=11 // pred_check_branch
          %507 = sbr.rel (%p505) target = $region28
        $region27: #{pavae_forward.1} parent=11 // pred_region
          %s509 = ssub.s32 16, 16
          %510 = vsyncadd [#allocation12], %s509
          %s512 = sshll.u32 [#allocation11], 4
          %s513 = int_to_ptr.vmem [resolvable:$true] %s512
          %515 = dma.hbm_to_vmem [thread:$0]  %s5, 16, %s513, [#allocation12]
        $region28: #{pavae_forward.1} parent=11 // pred_fallthru
          _
        // Predicated region
        $region29: #{pavae_forward.1} parent=11 // pred_check
          %p516 = pneg %p202
        $region30: #{pavae_forward.1} parent=11 // pred_check_branch
          %518 = sbr.rel (%p516) target = $region32
        $region31: #{pavae_forward.1} parent=11 // pred_region
          %s520 = ssub.s32 1024, 1024
          %521 = vsyncadd [#allocation12], %s520
          %s522 = sshll.u32 [#allocation13], 4
          %s523 = int_to_ptr.vmem [resolvable:$true] %s522
          %528 = dma.hbm_to_vmem [thread:$0]  %s6, 1024, %s523, [#allocation12], 64, 64, 4
        $region32: #{pavae_forward.1} parent=11 // pred_fallthru
          _
        // Predicated region
        $region33: #{pavae_forward.1} parent=11 // pred_check
          %p529 = pneg %p223
        $region34: #{pavae_forward.1} parent=11 // pred_check_branch
          %531 = sbr.rel (%p529) target = $region36
        $region35: #{pavae_forward.1} parent=11 // pred_region
          %s533 = ssub.s32 16, 16
          %534 = vsyncadd [#allocation15], %s533
          %s536 = sshll.u32 [#allocation14], 4
          %s537 = int_to_ptr.vmem [resolvable:$true] %s536
          %539 = dma.hbm_to_vmem [thread:$0]  %s7, 16, %s537, [#allocation15]
        $region36: #{pavae_forward.1} parent=11 // pred_fallthru
          _
        // Predicated region
        $region37: #{pavae_forward.1} parent=11 // pred_check
          %p540 = pneg %p244
        $region38: #{pavae_forward.1} parent=11 // pred_check_branch
          %542 = sbr.rel (%p540) target = $region40
        $region39: #{pavae_forward.1} parent=11 // pred_region
          %s544 = ssub.s32 1024, 1024
          %545 = vsyncadd [#allocation15], %s544
          %s546 = sshll.u32 [#allocation16], 4
          %s547 = int_to_ptr.vmem [resolvable:$true] %s546
          %552 = dma.hbm_to_vmem [thread:$0]  %s8, 1024, %s547, [#allocation15], 64, 64, 4
        $region40: #{pavae_forward.1} parent=11 // pred_fallthru
          _
        // Predicated region
        $region41: #{pavae_forward.1} parent=11 // pred_check
          %p553 = pneg %p265
        $region42: #{pavae_forward.1} parent=11 // pred_check_branch
          %555 = sbr.rel (%p553) target = $region44
        $region43: #{pavae_forward.1} parent=11 // pred_region
          %s557 = ssub.s32 16, 16
          %558 = vsyncadd [#allocation18], %s557
          %s560 = sshll.u32 [#allocation17], 4
          %s561 = int_to_ptr.vmem [resolvable:$true] %s560
          %563 = dma.hbm_to_vmem [thread:$0]  %s9, 16, %s561, [#allocation18]
        $region44: #{pavae_forward.1} parent=11 // pred_fallthru
          _
        // Predicated region
        $region45: #{pavae_forward.1} parent=11 // pred_check
          %p564 = pneg %p286
        $region46: #{pavae_forward.1} parent=11 // pred_check_branch
          %566 = sbr.rel (%p564) target = $region48
        $region47: #{pavae_forward.1} parent=11 // pred_region
          %s568 = ssub.s32 512, 512
          %569 = vsyncadd [#allocation18], %s568
          %s570 = sshll.u32 [#allocation19], 4
          %s571 = int_to_ptr.vmem [resolvable:$true] %s570
          %576 = dma.hbm_to_vmem [thread:$0]  %s10, 512, %s571, [#allocation18], 64, 64, 4
        $region48: #{pavae_forward.1} parent=11 // pred_fallthru
          _
        // Predicated region
        $region49: #{pavae_forward.1} parent=11 // pred_check
          %p577 = pneg %p307
        $region50: #{pavae_forward.1} parent=11 // pred_check_branch
          %579 = sbr.rel (%p577) target = $region52
        $region51: #{pavae_forward.1} parent=11 // pred_region
          %s581 = ssub.s32 16, 16
          %582 = vsyncadd [#allocation21], %s581
          %s584 = sshll.u32 [#allocation20], 4
          %s585 = int_to_ptr.vmem [resolvable:$true] %s584
          %587 = dma.hbm_to_vmem [thread:$0]  %s11, 16, %s585, [#allocation21]
        $region52: #{pavae_forward.1} parent=11 // pred_fallthru
          _
        // Predicated region
        $region53: #{pavae_forward.1} parent=11 // pred_check
          %p588 = pneg %p328
        $region54: #{pavae_forward.1} parent=11 // pred_check_branch
          %590 = sbr.rel (%p588) target = $region56
        $region55: #{pavae_forward.1} parent=11 // pred_region
          %s592 = ssub.s32 2048, 2048
          %593 = vsyncadd [#allocation21], %s592
          %s594 = sshll.u32 [#allocation22], 4
          %s595 = int_to_ptr.vmem [resolvable:$true] %s594
          %600 = dma.hbm_to_vmem [thread:$0]  %s12, 2048, %s595, [#allocation21], 128, 128, 8
        $region56: #{pavae_forward.1} parent=11 // pred_fallthru
          _
        // Predicated region
        $region57: #{pavae_forward.1} parent=11 // pred_check
          %p601 = pneg %p349
        $region58: #{pavae_forward.1} parent=11 // pred_check_branch
          %603 = sbr.rel (%p601) target = $region60
        $region59: #{pavae_forward.1} parent=11 // pred_region
          %s605 = ssub.s32 32, 32
          %606 = vsyncadd [#allocation24], %s605
          %s608 = sshll.u32 [#allocation23], 4
          %s609 = int_to_ptr.vmem [resolvable:$true] %s608
          %611 = dma.hbm_to_vmem [thread:$0]  %s13, 32, %s609, [#allocation24]
        $region60: #{pavae_forward.1} parent=11 // pred_fallthru
          _
      $region12: #{pavae_forward.1} parent=5 // pred_fallthru
        _
      %p612 = scmp.lt.s32.totalorder %s45, 2
      // Predicated region
      $region61: #{pavae_forward.1} parent=5 // pred_check
        %p613 = pneg %p612
      $region62: #{pavae_forward.1} parent=5 // pred_check_branch
        %615 = sbr.rel (%p613) target = $region64
      $region63: #{pavae_forward.1} parent=5 // pred_region
        // Predicated region
        $region65: #{pavae_forward.1} parent=63 // pred_check
          %p616 = pneg %p65
        $region66: #{pavae_forward.1} parent=63 // pred_check_branch
          %618 = sbr.rel (%p616) target = $region68
        $region67: #{pavae_forward.1} parent=63 // pred_region
          %s619 = sand.u32 %s55, 1
          %s620 = scalar_lea.sflag [#allocation3], %s619
          %s621 = sand.u32 %s55, 1
          %s622 = smul.addr %s621, 128
          %s623 = scalar_lea.vmem [#allocation2], %s622
          %s624 = smul.u32 16, %s45
          %s626 = ssub.s32 2048, 2048
          %627 = vsyncadd %s620, %s626
          %s628 = smul.addr %s624, 2
          %s629 = smul.addr %s628, 64
          %s630 = scalar_lea.hbm %s0, %s629
          %s631 = sshll.u32 %s623, 4
          %s632 = int_to_ptr.vmem [resolvable:$true] %s631
          %637 = dma.hbm_to_vmem [thread:$0]  %s630, 2048, %s632, %s620, 128, 128, 8
        $region68: #{pavae_forward.1} parent=63 // pred_fallthru
          _
        // Predicated region
        $region69: #{pavae_forward.1} parent=63 // pred_check
          %p638 = pneg %p91
        $region70: #{pavae_forward.1} parent=63 // pred_check_branch
          %640 = sbr.rel (%p638) target = $region72
        $region71: #{pavae_forward.1} parent=63 // pred_region
          %s641 = sand.u32 %s45, 1
          %s642 = scalar_lea.sflag [#allocation6], %s641
          %s643 = sand.u32 %s81, 1
          %s644 = smul.addr %s643, 128
          %s645 = scalar_lea.vmem [#allocation5], %s644
          %s646 = smul.u32 16, %s45
          %s648 = ssub.s32 2048, 2048
          %649 = vsyncadd %s642, %s648
          %s650 = smul.addr %s646, 128
          %s651 = scalar_lea.hbm %s1, %s650
          %s652 = sshll.u32 %s645, 4
          %s653 = int_to_ptr.vmem [resolvable:$true] %s652
          %658 = dma.hbm_to_vmem [thread:$0]  %s651, 2048, %s653, %s642, 128, 128, 8
        $region72: #{pavae_forward.1} parent=63 // pred_fallthru
          _
      $region64: #{pavae_forward.1} parent=5 // pred_fallthru
        _
      %p659 = scmp.le.s32.totalorder 1, %s45
      %p660 = scmp.lt.s32.totalorder %s45, 3
      %p661 = pnand %p659, %p660
      %p662 = pneg %p661
      // Predicated region
      $region73: #{pavae_forward.1} parent=5 // pred_check
        _
      $region74: #{pavae_forward.1} parent=5 // pred_check_branch
        %664 = sbr.rel (%p661) target = $region76
      $region75: #{pavae_forward.1} parent=5 // pred_region
        %s665 = ssub.s32 %s45, 1
        %s666 = sand.u32 %s58, 1
        %s667 = scalar_lea.sflag [#allocation3], %s666
        %s668 = sand.u32 %s58, 1
        %s669 = smul.addr %s668, 128
        %s670 = scalar_lea.vmem [#allocation2], %s669
        // Predicated region
        $region77: #{pavae_forward.1} parent=75 // pred_check
          %p671 = pneg %p71
        $region78: #{pavae_forward.1} parent=75 // pred_check_branch
          %673 = sbr.rel (%p671) target = $region80
        $region79: #{pavae_forward.1} parent=75 // pred_region
          %674 = dma.done %s667, 2048
        $region80: #{pavae_forward.1} parent=75 // pred_fallthru
          _
        %s675 = sand.u32 %s50, 1
        %s676 = scalar_lea.sflag [#allocation6], %s675
        %s677 = sand.u32 %s84, 1
        %s678 = smul.addr %s677, 128
        %s679 = scalar_lea.vmem [#allocation5], %s678
        // Predicated region
        $region81: #{pavae_forward.1} parent=75 // pred_check
          %p680 = pneg %p97
        $region82: #{pavae_forward.1} parent=75 // pred_check_branch
          %682 = sbr.rel (%p680) target = $region84
        $region83: #{pavae_forward.1} parent=75 // pred_region
          %683 = dma.done %s676, 2048
        $region84: #{pavae_forward.1} parent=75 // pred_fallthru
          _
        // Predicated region
        $region85: #{pavae_forward.1} parent=75 // pred_check
          %p684 = pneg %p118
        $region86: #{pavae_forward.1} parent=75 // pred_check_branch
          %686 = sbr.rel (%p684) target = $region88
        $region87: #{pavae_forward.1} parent=75 // pred_region
          %687 = dma.done [#allocation6], 2048
        $region88: #{pavae_forward.1} parent=75 // pred_fallthru
          _
        // Predicated region
        $region89: #{pavae_forward.1} parent=75 // pred_check
          %p688 = pneg %p139
        $region90: #{pavae_forward.1} parent=75 // pred_check_branch
          %690 = sbr.rel (%p688) target = $region92
        $region91: #{pavae_forward.1} parent=75 // pred_region
          %691 = dma.done [#allocation9], 16
        $region92: #{pavae_forward.1} parent=75 // pred_fallthru
          _
        // Predicated region
        $region93: #{pavae_forward.1} parent=75 // pred_check
          %p692 = pneg %p160
        $region94: #{pavae_forward.1} parent=75 // pred_check_branch
          %694 = sbr.rel (%p692) target = $region96
        $region95: #{pavae_forward.1} parent=75 // pred_region
          %695 = dma.done [#allocation9], 1024
        $region96: #{pavae_forward.1} parent=75 // pred_fallthru
          _
        // Predicated region
        $region97: #{pavae_forward.1} parent=75 // pred_check
          %p696 = pneg %p181
        $region98: #{pavae_forward.1} parent=75 // pred_check_branch
          %698 = sbr.rel (%p696) target = $region100
        $region99: #{pavae_forward.1} parent=75 // pred_region
          %699 = dma.done [#allocation12], 16
        $region100: #{pavae_forward.1} parent=75 // pred_fallthru
          _
        // Predicated region
        $region101: #{pavae_forward.1} parent=75 // pred_check
          %p700 = pneg %p202
        $region102: #{pavae_forward.1} parent=75 // pred_check_branch
          %702 = sbr.rel (%p700) target = $region104
        $region103: #{pavae_forward.1} parent=75 // pred_region
          %703 = dma.done [#allocation12], 1024
        $region104: #{pavae_forward.1} parent=75 // pred_fallthru
          _
        // Predicated region
        $region105: #{pavae_forward.1} parent=75 // pred_check
          %p704 = pneg %p223
        $region106: #{pavae_forward.1} parent=75 // pred_check_branch
          %706 = sbr.rel (%p704) target = $region108
        $region107: #{pavae_forward.1} parent=75 // pred_region
          %707 = dma.done [#allocation15], 16
        $region108: #{pavae_forward.1} parent=75 // pred_fallthru
          _
        // Predicated region
        $region109: #{pavae_forward.1} parent=75 // pred_check
          %p708 = pneg %p244
        $region110: #{pavae_forward.1} parent=75 // pred_check_branch
          %710 = sbr.rel (%p708) target = $region112
        $region111: #{pavae_forward.1} parent=75 // pred_region
          %711 = dma.done [#allocation15], 1024
        $region112: #{pavae_forward.1} parent=75 // pred_fallthru
          _
        // Predicated region
        $region113: #{pavae_forward.1} parent=75 // pred_check
          %p712 = pneg %p265
        $region114: #{pavae_forward.1} parent=75 // pred_check_branch
          %714 = sbr.rel (%p712) target = $region116
        $region115: #{pavae_forward.1} parent=75 // pred_region
          %715 = dma.done [#allocation18], 16
        $region116: #{pavae_forward.1} parent=75 // pred_fallthru
          _
        // Predicated region
        $region117: #{pavae_forward.1} parent=75 // pred_check
          %p716 = pneg %p286
        $region118: #{pavae_forward.1} parent=75 // pred_check_branch
          %718 = sbr.rel (%p716) target = $region120
        $region119: #{pavae_forward.1} parent=75 // pred_region
          %719 = dma.done [#allocation18], 512
        $region120: #{pavae_forward.1} parent=75 // pred_fallthru
          _
        // Predicated region
        $region121: #{pavae_forward.1} parent=75 // pred_check
          %p720 = pneg %p307
        $region122: #{pavae_forward.1} parent=75 // pred_check_branch
          %722 = sbr.rel (%p720) target = $region124
        $region123: #{pavae_forward.1} parent=75 // pred_region
          %723 = dma.done [#allocation21], 16
        $region124: #{pavae_forward.1} parent=75 // pred_fallthru
          _
        // Predicated region
        $region125: #{pavae_forward.1} parent=75 // pred_check
          %p724 = pneg %p328
        $region126: #{pavae_forward.1} parent=75 // pred_check_branch
          %726 = sbr.rel (%p724) target = $region128
        $region127: #{pavae_forward.1} parent=75 // pred_region
          %727 = dma.done [#allocation21], 2048
        $region128: #{pavae_forward.1} parent=75 // pred_fallthru
          _
        // Predicated region
        $region129: #{pavae_forward.1} parent=75 // pred_check
          %p728 = pneg %p349
        $region130: #{pavae_forward.1} parent=75 // pred_check_branch
          %730 = sbr.rel (%p728) target = $region132
        $region131: #{pavae_forward.1} parent=75 // pred_region
          %731 = dma.done [#allocation24], 32
        $region132: #{pavae_forward.1} parent=75 // pred_fallthru
          _
        %s732 = sand.u32 %s58, 1
        %s733 = scalar_lea.sflag [#allocation3], %s732
        %s734 = sand.u32 %s58, 1
        %s735 = smul.addr %s734, 128
        %s736 = scalar_lea.vmem [#allocation2], %s735
        %p737 = pneg %p71
        %p738 = pneg %p68
        %s739 = sand.u32 %s50, 1
        %s740 = scalar_lea.sflag [#allocation6], %s739
        %s741 = sand.u32 %s84, 1
        %s742 = smul.addr %s741, 128
        %s743 = scalar_lea.vmem [#allocation5], %s742
        %p744 = pneg %p97
        %p745 = pneg %p94
        %p746 = pneg %p118
        %p747 = pneg %p115
        %p748 = pneg %p139
        %p749 = pneg %p136
        %p750 = pneg %p160
        %p751 = pneg %p157
        %p752 = pneg %p181
        %p753 = pneg %p178
        %p754 = pneg %p202
        %p755 = pneg %p199
        %p756 = pneg %p223
        %p757 = pneg %p220
        %p758 = pneg %p244
        %p759 = pneg %p241
        %p760 = pneg %p265
        %p761 = pneg %p262
        %p762 = pneg %p286
        %p763 = pneg %p283
        %p764 = pneg %p307
        %p765 = pneg %p304
        %p766 = pneg %p328
        %p767 = pneg %p325
        %p768 = pneg %p349
        %p769 = pneg %p346
        %p770 = pneg %p375
        %p771 = pneg %p372
        %s772 = sand.u32 %s362, 1
        %s773 = scalar_lea.sflag [#allocation4], %s772
        %s774 = sand.u32 %s362, 1
        %s775 = smul.addr %s774, 128
        %s776 = scalar_lea.vmem [#allocation25], %s775
        %p777 = pneg %p401
        %p778 = pneg %p398
        %s779 = sand.u32 %s50, 1
        %s780 = scalar_lea.sflag [#allocation27], %s779
        %s781 = sand.u32 %s388, 1
        %s782 = smul.addr %s781, 256
        %s783 = scalar_lea.vmem [#allocation26], %s782
        %p784 = pneg %p427
        %p785 = pneg %p424
        %s786 = sand.u32 %s50, 1
        %s787 = scalar_lea.sflag [#allocation27], %s786
        %s788 = sand.u32 %s414, 1
        %s789 = smul.addr %s788, 128
        %s790 = scalar_lea.vmem [#allocation28], %s789
        %p791 = pneg %p453
        %p792 = pneg %p450
        %s793 = sand.u32 %s440, 1
        %s794 = scalar_lea.sflag [#allocation30], %s793
        %s795 = sand.u32 %s440, 1
        %s796 = smul.addr %s795, 128
        %s797 = scalar_lea.vmem [#allocation29], %s796
        %s798 = smul.u32 16, %s50
        %s799 = smul.u32 16, %s50
        %s800 = smul.u32 16, %s50
        %s801 = smul.u32 16, %s50
        %s802 = smul.u32 16, %s50
        %s803 = smul.u32 16, %s50
        %v805 = vld [vmem:[%s670] sm:$0xff]
        %v806 = vld [vmem:[%s670 + $0x8] sm:$0xff]
        %v807 = vld [vmem:[%s670 + $0x10] sm:$0xff]
        %v808 = vld [vmem:[%s670 + $0x18] sm:$0xff]
        %v809 = vld [vmem:[%s670 + $0x20] sm:$0xff]
        %v810 = vld [vmem:[%s670 + $0x28] sm:$0xff]
        %v811 = vld [vmem:[%s670 + $0x30] sm:$0xff]
        %v812 = vld [vmem:[%s670 + $0x38] sm:$0xff]
        %v813 = vld [vmem:[%s670 + $0x40] sm:$0xff]
        %v814 = vld [vmem:[%s670 + $0x48] sm:$0xff]
        %v815 = vld [vmem:[%s670 + $0x50] sm:$0xff]
        %v816 = vld [vmem:[%s670 + $0x58] sm:$0xff]
        %v817 = vld [vmem:[%s670 + $0x60] sm:$0xff]
        %v818 = vld [vmem:[%s670 + $0x68] sm:$0xff]
        %v819 = vld [vmem:[%s670 + $0x70] sm:$0xff]
        %v820 = vld [vmem:[%s670 + $0x78] sm:$0xff]
        %v821 = vld [vmem:[#allocation7] sm:$0xf]
        %v822 = vld [vmem:[#allocation7 + $0x4] sm:$0xf]
        %v823 = vld [vmem:[#allocation7 + $0x8] sm:$0xf]
        %v824 = vld [vmem:[#allocation7 + $0xc] sm:$0xf]
        %v825 = vld [vmem:[#allocation7 + $0x10] sm:$0xf]
        %v826 = vld [vmem:[#allocation7 + $0x14] sm:$0xf]
        %v827 = vld [vmem:[#allocation7 + $0x18] sm:$0xf]
        %v828 = vld [vmem:[#allocation7 + $0x1c] sm:$0xf]
        %v829 = vld [vmem:[#allocation7 + $0x20] sm:$0xf]
        %v830 = vld [vmem:[#allocation7 + $0x24] sm:$0xf]
        %v831 = vld [vmem:[#allocation7 + $0x28] sm:$0xf]
        %v832 = vld [vmem:[#allocation7 + $0x2c] sm:$0xf]
        %v833 = vld [vmem:[#allocation7 + $0x30] sm:$0xf]
        %v834 = vld [vmem:[#allocation7 + $0x34] sm:$0xf]
        %v835 = vld [vmem:[#allocation7 + $0x38] sm:$0xf]
        %v836 = vld [vmem:[#allocation7 + $0x3c] sm:$0xf]
        %v837 = vld [vmem:[#allocation7 + $0x40] sm:$0xf]
        %v838 = vld [vmem:[#allocation7 + $0x44] sm:$0xf]
        %v839 = vld [vmem:[#allocation7 + $0x48] sm:$0xf]
        %v840 = vld [vmem:[#allocation7 + $0x4c] sm:$0xf]
        %v841 = vld [vmem:[#allocation7 + $0x50] sm:$0xf]
        %v842 = vld [vmem:[#allocation7 + $0x54] sm:$0xf]
        %v843 = vld [vmem:[#allocation7 + $0x58] sm:$0xf]
        %v844 = vld [vmem:[#allocation7 + $0x5c] sm:$0xf]
        %v845 = vld [vmem:[#allocation7 + $0x60] sm:$0xf]
        %v846 = vld [vmem:[#allocation7 + $0x64] sm:$0xf]
        %v847 = vld [vmem:[#allocation7 + $0x68] sm:$0xf]
        %v848 = vld [vmem:[#allocation7 + $0x6c] sm:$0xf]
        %v849 = vld [vmem:[#allocation7 + $0x70] sm:$0xf]
        %v850 = vld [vmem:[#allocation7 + $0x74] sm:$0xf]
        %v851 = vld [vmem:[#allocation7 + $0x78] sm:$0xf]
        %v852 = vld [vmem:[#allocation7 + $0x7c] sm:$0xf]
        %v853 = vld [vmem:[#allocation8] sm:$0x1]
        %v855 = vlaneseq
        %v856 = vshrl.u32 %v855, 7
        %v857 = vsub.s32 0, %v856
        %v858 = vrot.slane %v853, %v857
        %v876 = vunpack.c.l.b16 %v805
        %v877 = vunpack.c.h.b16 %v805
        %v878 = vunpack.c.l.b16 %v806
        %v879 = vunpack.c.h.b16 %v806
        %v880 = vunpack.c.l.b16 %v807
        %v881 = vunpack.c.h.b16 %v807
        %v882 = vunpack.c.l.b16 %v808
        %v883 = vunpack.c.h.b16 %v808
        %v884 = vunpack.c.l.b16 %v809
        %v885 = vunpack.c.h.b16 %v809
        %v886 = vunpack.c.l.b16 %v810
        %v887 = vunpack.c.h.b16 %v810
        %v888 = vunpack.c.l.b16 %v811
        %v889 = vunpack.c.h.b16 %v811
        %v890 = vunpack.c.l.b16 %v812
        %v891 = vunpack.c.h.b16 %v812
        %v892 = vunpack.c.l.b16 %v813
        %v893 = vunpack.c.h.b16 %v813
        %v894 = vunpack.c.l.b16 %v814
        %v895 = vunpack.c.h.b16 %v814
        %v896 = vunpack.c.l.b16 %v815
        %v897 = vunpack.c.h.b16 %v815
        %v898 = vunpack.c.l.b16 %v816
        %v899 = vunpack.c.h.b16 %v816
        %v900 = vunpack.c.l.b16 %v817
        %v901 = vunpack.c.h.b16 %v817
        %v902 = vunpack.c.l.b16 %v818
        %v903 = vunpack.c.h.b16 %v818
        %v904 = vunpack.c.l.b16 %v819
        %v905 = vunpack.c.h.b16 %v819
        %v906 = vunpack.c.l.b16 %v820
        %v907 = vunpack.c.h.b16 %v820
        %v908 = vpack.c.b16 %v878, %v876
        %v909 = vpack.c.b16 %v879, %v877
        %v910 = vpack.c.b16 %v882, %v880
        %v911 = vpack.c.b16 %v883, %v881
        %v912 = vpack.c.b16 %v886, %v884
        %v913 = vpack.c.b16 %v887, %v885
        %v914 = vpack.c.b16 %v890, %v888
        %v915 = vpack.c.b16 %v891, %v889
        %v916 = vpack.c.b16 %v894, %v892
        %v917 = vpack.c.b16 %v895, %v893
        %v918 = vpack.c.b16 %v898, %v896
        %v919 = vpack.c.b16 %v899, %v897
        %v920 = vpack.c.b16 %v902, %v900
        %v921 = vpack.c.b16 %v903, %v901
        %v922 = vpack.c.b16 %v906, %v904
        %v923 = vpack.c.b16 %v907, %v905
        %v972 = vunpack.c.l.b16 %v821
        %v973 = vunpack.c.l.b16 %v822
        %v974 = vunpack.c.l.b16 %v823
        %v975 = vunpack.c.l.b16 %v824
        %v976 = vunpack.c.l.b16 %v825
        %v977 = vunpack.c.l.b16 %v826
        %v978 = vunpack.c.l.b16 %v827
        %v979 = vunpack.c.l.b16 %v828
        %v980 = vunpack.c.l.b16 %v829
        %v981 = vunpack.c.l.b16 %v830
        %v982 = vunpack.c.l.b16 %v831
        %v983 = vunpack.c.l.b16 %v832
        %v984 = vunpack.c.l.b16 %v833
        %v985 = vunpack.c.l.b16 %v834
        %v986 = vunpack.c.l.b16 %v835
        %v987 = vunpack.c.l.b16 %v836
        %v988 = vunpack.c.l.b16 %v837
        %v989 = vunpack.c.l.b16 %v838
        %v990 = vunpack.c.l.b16 %v839
        %v991 = vunpack.c.l.b16 %v840
        %v992 = vunpack.c.l.b16 %v841
        %v993 = vunpack.c.l.b16 %v842
        %v994 = vunpack.c.l.b16 %v843
        %v995 = vunpack.c.l.b16 %v844
        %v996 = vunpack.c.l.b16 %v845
        %v997 = vunpack.c.l.b16 %v846
        %v998 = vunpack.c.l.b16 %v847
        %v999 = vunpack.c.l.b16 %v848
        %v1000 = vunpack.c.l.b16 %v849
        %v1001 = vunpack.c.l.b16 %v850
        %v1002 = vunpack.c.l.b16 %v851
        %v1003 = vunpack.c.l.b16 %v852
        %v1004 = vpack.c.b16 %v973, %v972
        %v1005 = vpack.c.b16 %v975, %v974
        %v1006 = vpack.c.b16 %v977, %v976
        %v1007 = vpack.c.b16 %v979, %v978
        %v1008 = vpack.c.b16 %v981, %v980
        %v1009 = vpack.c.b16 %v983, %v982
        %v1010 = vpack.c.b16 %v985, %v984
        %v1011 = vpack.c.b16 %v987, %v986
        %v1012 = vpack.c.b16 %v989, %v988
        %v1013 = vpack.c.b16 %v991, %v990
        %v1014 = vpack.c.b16 %v993, %v992
        %v1015 = vpack.c.b16 %v995, %v994
        %v1016 = vpack.c.b16 %v997, %v996
        %v1017 = vpack.c.b16 %v999, %v998
        %v1018 = vpack.c.b16 %v1001, %v1000
        %v1019 = vpack.c.b16 %v1003, %v1002
        %1036 = vmatprep.subr.bf16.mxu0 0
        %1037 = vmatpush1.bf16.msra.mxu0 %v1004
        %1038 = vmatprep.subr.bf16.mxu0 0
        %1039 = vmatpush1.bf16.msra.mxu0 %v1005
        %1040 = vmatprep.subr.bf16.mxu0 0
        %1041 = vmatpush1.bf16.msra.mxu0 %v1006
        %1042 = vmatprep.subr.bf16.mxu0 0
        %1043 = vmatpush1.bf16.msra.mxu0 %v1007
        %1044 = vmatprep.subr.bf16.mxu0 0
        %1045 = vmatpush1.bf16.msra.mxu0 %v1008
        %1046 = vmatprep.subr.bf16.mxu0 0
        %1047 = vmatpush1.bf16.msra.mxu0 %v1009
        %1048 = vmatprep.subr.bf16.mxu0 0
        %1049 = vmatpush1.bf16.msra.mxu0 %v1010
        %1050 = vmatprep.subr.bf16.mxu0 0
        %1051 = vmatpush1.bf16.msra.mxu0 %v1011
        %1052 = vmatprep.subr.bf16.mxu0 0
        %1053 = vmatpush1.bf16.msra.mxu0 %v1012
        %1054 = vmatprep.subr.bf16.mxu0 0
        %1055 = vmatpush1.bf16.msra.mxu0 %v1013
        %1056 = vmatprep.subr.bf16.mxu0 0
        %1057 = vmatpush1.bf16.msra.mxu0 %v1014
        %1058 = vmatprep.subr.bf16.mxu0 0
        %1059 = vmatpush1.bf16.msra.mxu0 %v1015
        %1060 = vmatprep.subr.bf16.mxu0 0
        %1061 = vmatpush1.bf16.msra.mxu0 %v1016
        %1062 = vmatprep.subr.bf16.mxu0 0
        %1063 = vmatpush1.bf16.msra.mxu0 %v1017
        %1064 = vmatprep.subr.bf16.mxu0 0
        %1065 = vmatpush1.bf16.msra.mxu0 %v1018
        %1066 = vmatprep.subr.bf16.mxu0 0
        %1067 = vmatpush1.bf16.msra.mxu0 %v1019
        %1068 = vmatprep.mubr.bf16.mxu0 %v909
        %1069 = vmatmul.mubr.bf16.gmra.mrb[0].mxu0 %v908
        %v1070 = vpop.f32.mrb[0].mxu0
        %v1071 = vadd.f32 %v858, %v1070
        %v1072 = vpop.f32.mrb[0].mxu0
        %v1073 = vpop.f32.mrb[0].mxu0
        %v1074 = vadd.f32 %v858, %v1073
        %v1075 = vpop.f32.mrb[0].mxu0
        %1076 = vmatprep.mubr.bf16.mxu0 %v911
        %1077 = vmatmul.mubr.bf16.gmra.mrb[0].mxu0 %v910
        %v1078 = vpop.f32.mrb[0].mxu0
        %v1079 = vadd.f32 %v858, %v1078
        %v1080 = vpop.f32.mrb[0].mxu0
        %v1081 = vpop.f32.mrb[0].mxu0
        %v1082 = vadd.f32 %v858, %v1081
        %v1083 = vpop.f32.mrb[0].mxu0
        %1084 = vmatprep.mubr.bf16.mxu0 %v913
        %1085 = vmatmul.mubr.bf16.gmra.mrb[0].mxu0 %v912
        %v1086 = vpop.f32.mrb[0].mxu0
        %v1087 = vadd.f32 %v858, %v1086
        %v1088 = vpop.f32.mrb[0].mxu0
        %v1089 = vpop.f32.mrb[0].mxu0
        %v1090 = vadd.f32 %v858, %v1089
        %v1091 = vpop.f32.mrb[0].mxu0
        %1092 = vmatprep.mubr.bf16.mxu0 %v915
        %1093 = vmatmul.mubr.bf16.gmra.mrb[0].mxu0 %v914
        %v1094 = vpop.f32.mrb[0].mxu0
        %v1095 = vadd.f32 %v858, %v1094
        %v1096 = vpop.f32.mrb[0].mxu0
        %v1097 = vpop.f32.mrb[0].mxu0
        %v1098 = vadd.f32 %v858, %v1097
        %v1099 = vpop.f32.mrb[0].mxu0
        %1100 = vmatprep.mubr.bf16.mxu0 %v917
        %1101 = vmatmul.mubr.bf16.gmra.mrb[0].mxu0 %v916
        %v1102 = vpop.f32.mrb[0].mxu0
        %v1103 = vadd.f32 %v858, %v1102
        %v1104 = vpop.f32.mrb[0].mxu0
        %v1105 = vpop.f32.mrb[0].mxu0
        %v1106 = vadd.f32 %v858, %v1105
        %v1107 = vpop.f32.mrb[0].mxu0
        %1108 = vmatprep.mubr.bf16.mxu0 %v919
        %1109 = vmatmul.mubr.bf16.gmra.mrb[0].mxu0 %v918
        %v1110 = vpop.f32.mrb[0].mxu0
        %v1111 = vadd.f32 %v858, %v1110
        %v1112 = vpop.f32.mrb[0].mxu0
        %v1113 = vpop.f32.mrb[0].mxu0
        %v1114 = vadd.f32 %v858, %v1113
        %v1115 = vpop.f32.mrb[0].mxu0
        %1116 = vmatprep.mubr.bf16.mxu0 %v921
        %1117 = vmatmul.mubr.bf16.gmra.mrb[0].mxu0 %v920
        %v1118 = vpop.f32.mrb[0].mxu0
        %v1119 = vadd.f32 %v858, %v1118
        %v1120 = vpop.f32.mrb[0].mxu0
        %v1121 = vpop.f32.mrb[0].mxu0
        %v1122 = vadd.f32 %v858, %v1121
        %v1123 = vpop.f32.mrb[0].mxu0
        %1124 = vmatprep.mubr.bf16.mxu0 %v923
        %1125 = vmatmul.mubr.bf16.gmra.mrb[0].mxu0 %v922
        %v1126 = vpop.f32.mrb[0].mxu0
        %v1127 = vadd.f32 %v858, %v1126
        %v1128 = vpop.f32.mrb[0].mxu0
        %v1129 = vpop.f32.mrb[0].mxu0
        %v1130 = vadd.f32 %v858, %v1129
        %v1131 = vpop.f32.mrb[0].mxu0
        %1132 = vdwg.mxu0
        %v1133 = vtanh.pop %v1071
        %v1134 = vtanh.pop %v1074
        %v1135 = vtanh.pop %v1079
        %v1136 = vtanh.pop %v1082
        %v1137 = vtanh.pop %v1087
        %v1138 = vtanh.pop %v1090
        %v1139 = vtanh.pop %v1095
        %v1140 = vtanh.pop %v1098
        %v1141 = vtanh.pop %v1103
        %v1142 = vtanh.pop %v1106
        %v1143 = vtanh.pop %v1111
        %v1144 = vtanh.pop %v1114
        %v1145 = vtanh.pop %v1119
        %v1146 = vtanh.pop %v1122
        %v1147 = vtanh.pop %v1127
        %v1148 = vtanh.pop %v1130
        %v1149 = vpack.c.bf16 %v1134, %v1133
        %v1150 = vpack.c.bf16 %v1136, %v1135
        %v1151 = vpack.c.bf16 %v1138, %v1137
        %v1152 = vpack.c.bf16 %v1140, %v1139
        %v1153 = vpack.c.bf16 %v1142, %v1141
        %v1154 = vpack.c.bf16 %v1144, %v1143
        %v1155 = vpack.c.bf16 %v1146, %v1145
        %v1156 = vpack.c.bf16 %v1148, %v1147
        %v1157 = vld [vmem:[#allocation10] sm:$0xf]
        %v1158 = vld [vmem:[#allocation10 + $0x4] sm:$0xf]
        %v1159 = vld [vmem:[#allocation10 + $0x8] sm:$0xf]
        %v1160 = vld [vmem:[#allocation10 + $0xc] sm:$0xf]
        %v1161 = vld [vmem:[#allocation10 + $0x10] sm:$0xf]
        %v1162 = vld [vmem:[#allocation10 + $0x14] sm:$0xf]
        %v1163 = vld [vmem:[#allocation10 + $0x18] sm:$0xf]
        %v1164 = vld [vmem:[#allocation10 + $0x1c] sm:$0xf]
        %v1165 = vld [vmem:[#allocation10 + $0x20] sm:$0xf]
        %v1166 = vld [vmem:[#allocation10 + $0x24] sm:$0xf]
        %v1167 = vld [vmem:[#allocation10 + $0x28] sm:$0xf]
        %v1168 = vld [vmem:[#allocation10 + $0x2c] sm:$0xf]
        %v1169 = vld [vmem:[#allocation10 + $0x30] sm:$0xf]
        %v1170 = vld [vmem:[#allocation10 + $0x34] sm:$0xf]
        %v1171 = vld [vmem:[#allocation10 + $0x38] sm:$0xf]
        %v1172 = vld [vmem:[#allocation10 + $0x3c] sm:$0xf]
        %v1173 = vld [vmem:[#allocation11] sm:$0x1]
        %v1175 = vlaneseq
        %v1176 = vshrl.u32 %v1175, 7
        %v1177 = vsub.s32 0, %v1176
        %v1178 = vrot.slane %v1173, %v1177
        %v1196 = vunpack.c.l.b16 %v1157
        %v1197 = vunpack.c.l.b16 %v1158
        %v1198 = vunpack.c.l.b16 %v1159
        %v1199 = vunpack.c.l.b16 %v1160
        %v1200 = vunpack.c.l.b16 %v1161
        %v1201 = vunpack.c.l.b16 %v1162
        %v1202 = vunpack.c.l.b16 %v1163
        %v1203 = vunpack.c.l.b16 %v1164
        %v1204 = vunpack.c.l.b16 %v1165
        %v1205 = vunpack.c.l.b16 %v1166
        %v1206 = vunpack.c.l.b16 %v1167
        %v1207 = vunpack.c.l.b16 %v1168
        %v1208 = vunpack.c.l.b16 %v1169
        %v1209 = vunpack.c.l.b16 %v1170
        %v1210 = vunpack.c.l.b16 %v1171
        %v1211 = vunpack.c.l.b16 %v1172
        %v1212 = vpack.c.b16 %v1197, %v1196
        %v1213 = vpack.c.b16 %v1199, %v1198
        %v1214 = vpack.c.b16 %v1201, %v1200
        %v1215 = vpack.c.b16 %v1203, %v1202
        %v1216 = vpack.c.b16 %v1205, %v1204
        %v1217 = vpack.c.b16 %v1207, %v1206
        %v1218 = vpack.c.b16 %v1209, %v1208
        %v1219 = vpack.c.b16 %v1211, %v1210
        %1228 = vmatprep.subr.bf16.mxu0 0
        %1229 = vmatpush1.bf16.msra.mxu0 %v1212
        %1230 = vmatprep.subr.bf16.mxu0 0
        %1231 = vmatpush1.bf16.msra.mxu0 %v1213
        %1232 = vmatprep.subr.bf16.mxu0 0
        %1233 = vmatpush1.bf16.msra.mxu0 %v1214
        %1234 = vmatprep.subr.bf16.mxu0 0
        %1235 = vmatpush1.bf16.msra.mxu0 %v1215
        %1236 = vmatprep.subr.bf16.mxu0 0
        %1237 = vmatpush1.bf16.msra.mxu0 %v1216
        %1238 = vmatprep.subr.bf16.mxu0 0
        %1239 = vmatpush1.bf16.msra.mxu0 %v1217
        %1240 = vmatprep.subr.bf16.mxu0 0
        %1241 = vmatpush1.bf16.msra.mxu0 %v1218
        %1242 = vmatprep.subr.bf16.mxu0 0
        %1243 = vmatpush1.bf16.msra.mxu0 %v1219
        %1244 = vmatprep.subr.bf16.mxu0 0
        %1245 = vmatpush1.bf16.msra.mxu0 0
        %1246 = vmatprep.subr.bf16.mxu0 0
        %1247 = vmatpush1.bf16.msra.mxu0 0
        %1248 = vmatprep.subr.bf16.mxu0 0
        %1249 = vmatpush1.bf16.msra.mxu0 0
        %1250 = vmatprep.subr.bf16.mxu0 0
        %1251 = vmatpush1.bf16.msra.mxu0 0
        %1252 = vmatprep.subr.bf16.mxu0 0
        %1253 = vmatpush1.bf16.msra.mxu0 0
        %1254 = vmatprep.subr.bf16.mxu0 0
        %1255 = vmatpush1.bf16.msra.mxu0 0
        %1256 = vmatprep.subr.bf16.mxu0 0
        %1257 = vmatpush1.bf16.msra.mxu0 0
        %1258 = vmatprep.subr.bf16.mxu0 0
        %1259 = vmatpush1.bf16.msra.mxu0 0
        %1260 = vmatprep.mubr.bf16.mxu0 0
        %1261 = vmatmul.mubr.bf16.gmra.mrb[0].mxu0 %v1149
        %v1262 = vpop.f32.mrb[0].mxu0
        %v1263 = vadd.f32 %v1178, %v1262
        %v1264 = vpop.f32.mrb[0].mxu0
        %v1265 = vpop.f32.mrb[0].mxu0
        %v1266 = vadd.f32 %v1178, %v1265
        %v1267 = vpop.f32.mrb[0].mxu0
        %1268 = vmatprep.mubr.bf16.mxu0 0
        %1269 = vmatmul.mubr.bf16.gmra.mrb[0].mxu0 %v1150
        %v1270 = vpop.f32.mrb[0].mxu0
        %v1271 = vadd.f32 %v1178, %v1270
        %v1272 = vpop.f32.mrb[0].mxu0
        %v1273 = vpop.f32.mrb[0].mxu0
        %v1274 = vadd.f32 %v1178, %v1273
        %v1275 = vpop.f32.mrb[0].mxu0
        %1276 = vmatprep.mubr.bf16.mxu0 0
        %1277 = vmatmul.mubr.bf16.gmra.mrb[0].mxu0 %v1151
        %v1278 = vpop.f32.mrb[0].mxu0
        %v1279 = vadd.f32 %v1178, %v1278
        %v1280 = vpop.f32.mrb[0].mxu0
        %v1281 = vpop.f32.mrb[0].mxu0
        %v1282 = vadd.f32 %v1178, %v1281
        %v1283 = vpop.f32.mrb[0].mxu0
        %1284 = vmatprep.mubr.bf16.mxu0 0
        %1285 = vmatmul.mubr.bf16.gmra.mrb[0].mxu0 %v1152
        %v1286 = vpop.f32.mrb[0].mxu0
        %v1287 = vadd.f32 %v1178, %v1286
        %v1288 = vpop.f32.mrb[0].mxu0
        %v1289 = vpop.f32.mrb[0].mxu0
        %v1290 = vadd.f32 %v1178, %v1289
        %v1291 = vpop.f32.mrb[0].mxu0
        %1292 = vmatprep.mubr.bf16.mxu0 0
        %1293 = vmatmul.mubr.bf16.gmra.mrb[0].mxu0 %v1153
        %v1294 = vpop.f32.mrb[0].mxu0
        %v1295 = vadd.f32 %v1178, %v1294
        %v1296 = vpop.f32.mrb[0].mxu0
        %v1297 = vpop.f32.mrb[0].mxu0
        %v1298 = vadd.f32 %v1178, %v1297
        %v1299 = vpop.f32.mrb[0].mxu0
        %1300 = vmatprep.mubr.bf16.mxu0 0
        %1301 = vmatmul.mubr.bf16.gmra.mrb[0].mxu0 %v1154
        %v1302 = vpop.f32.mrb[0].mxu0
        %v1303 = vadd.f32 %v1178, %v1302
        %v1304 = vpop.f32.mrb[0].mxu0
        %v1305 = vpop.f32.mrb[0].mxu0
        %v1306 = vadd.f32 %v1178, %v1305
        %v1307 = vpop.f32.mrb[0].mxu0
        %1308 = vmatprep.mubr.bf16.mxu0 0
        %1309 = vmatmul.mubr.bf16.gmra.mrb[0].mxu0 %v1155
        %v1310 = vpop.f32.mrb[0].mxu0
        %v1311 = vadd.f32 %v1178, %v1310
        %v1312 = vpop.f32.mrb[0].mxu0
        %v1313 = vpop.f32.mrb[0].mxu0
        %v1314 = vadd.f32 %v1178, %v1313
        %v1315 = vpop.f32.mrb[0].mxu0
        %1316 = vmatprep.mubr.bf16.mxu0 0
        %1317 = vmatmul.mubr.bf16.gmra.mrb[0].mxu0 %v1156
        %v1318 = vpop.f32.mrb[0].mxu0
        %v1319 = vadd.f32 %v1178, %v1318
        %v1320 = vpop.f32.mrb[0].mxu0
        %v1321 = vpop.f32.mrb[0].mxu0
        %v1322 = vadd.f32 %v1178, %v1321
        %v1323 = vpop.f32.mrb[0].mxu0
        %1324 = vdwg.mxu0
        %v1325 = vmax.f32 %v1263, 0.0
        %v1326 = vmax.f32 %v1266, 0.0
        %v1327 = vmax.f32 %v1271, 0.0
        %v1328 = vmax.f32 %v1274, 0.0
        %v1329 = vmax.f32 %v1279, 0.0
        %v1330 = vmax.f32 %v1282, 0.0
        %v1331 = vmax.f32 %v1287, 0.0
        %v1332 = vmax.f32 %v1290, 0.0
        %v1333 = vmax.f32 %v1295, 0.0
        %v1334 = vmax.f32 %v1298, 0.0
        %v1335 = vmax.f32 %v1303, 0.0
        %v1336 = vmax.f32 %v1306, 0.0
        %v1337 = vmax.f32 %v1311, 0.0
        %v1338 = vmax.f32 %v1314, 0.0
        %v1339 = vmax.f32 %v1319, 0.0
        %v1340 = vmax.f32 %v1322, 0.0
        %v1341 = vpack.c.bf16 %v1326, %v1325
        %v1342 = vpack.c.bf16 %v1328, %v1327
        %v1343 = vpack.c.bf16 %v1330, %v1329
        %v1344 = vpack.c.bf16 %v1332, %v1331
        %v1345 = vpack.c.bf16 %v1334, %v1333
        %v1346 = vpack.c.bf16 %v1336, %v1335
        %v1347 = vpack.c.bf16 %v1338, %v1337
        %v1348 = vpack.c.bf16 %v1340, %v1339
        %v1349 = vld [vmem:[#allocation13] sm:$0xf]
        %v1350 = vld [vmem:[#allocation13 + $0x4] sm:$0xf]
        %v1351 = vld [vmem:[#allocation13 + $0x8] sm:$0xf]
        %v1352 = vld [vmem:[#allocation13 + $0xc] sm:$0xf]
        %v1353 = vld [vmem:[#allocation13 + $0x10] sm:$0xf]
        %v1354 = vld [vmem:[#allocation13 + $0x14] sm:$0xf]
        %v1355 = vld [vmem:[#allocation13 + $0x18] sm:$0xf]
        %v1356 = vld [vmem:[#allocation13 + $0x1c] sm:$0xf]
        %v1357 = vld [vmem:[#allocation13 + $0x20] sm:$0xf]
        %v1358 = vld [vmem:[#allocation13 + $0x24] sm:$0xf]
        %v1359 = vld [vmem:[#allocation13 + $0x28] sm:$0xf]
        %v1360 = vld [vmem:[#allocation13 + $0x2c] sm:$0xf]
        %v1361 = vld [vmem:[#allocation13 + $0x30] sm:$0xf]
        %v1362 = vld [vmem:[#allocation13 + $0x34] sm:$0xf]
        %v1363 = vld [vmem:[#allocation13 + $0x38] sm:$0xf]
        %v1364 = vld [vmem:[#allocation13 + $0x3c] sm:$0xf]
        %v1365 = vld [vmem:[#allocation14] sm:$0x1]
        %v1367 = vlaneseq
        %v1368 = vshrl.u32 %v1367, 7
        %v1369 = vsub.s32 0, %v1368
        %v1370 = vrot.slane %v1365, %v1369
        %v1388 = vunpack.c.l.b16 %v1349
        %v1389 = vunpack.c.l.b16 %v1350
        %v1390 = vunpack.c.l.b16 %v1351
        %v1391 = vunpack.c.l.b16 %v1352
        %v1392 = vunpack.c.l.b16 %v1353
        %v1393 = vunpack.c.l.b16 %v1354
        %v1394 = vunpack.c.l.b16 %v1355
        %v1395 = vunpack.c.l.b16 %v1356
        %v1396 = vunpack.c.l.b16 %v1357
        %v1397 = vunpack.c.l.b16 %v1358
        %v1398 = vunpack.c.l.b16 %v1359
        %v1399 = vunpack.c.l.b16 %v1360
        %v1400 = vunpack.c.l.b16 %v1361
        %v1401 = vunpack.c.l.b16 %v1362
        %v1402 = vunpack.c.l.b16 %v1363
        %v1403 = vunpack.c.l.b16 %v1364
        %v1404 = vpack.c.b16 %v1389, %v1388
        %v1405 = vpack.c.b16 %v1391, %v1390
        %v1406 = vpack.c.b16 %v1393, %v1392
        %v1407 = vpack.c.b16 %v1395, %v1394
        %v1408 = vpack.c.b16 %v1397, %v1396
        %v1409 = vpack.c.b16 %v1399, %v1398
        %v1410 = vpack.c.b16 %v1401, %v1400
        %v1411 = vpack.c.b16 %v1403, %v1402
        %1420 = vmatprep.subr.bf16.mxu0 0
        %1421 = vmatpush1.bf16.msra.mxu0 %v1404
        %1422 = vmatprep.subr.bf16.mxu0 0
        %1423 = vmatpush1.bf16.msra.mxu0 %v1405
        %1424 = vmatprep.subr.bf16.mxu0 0
        %1425 = vmatpush1.bf16.msra.mxu0 %v1406
        %1426 = vmatprep.subr.bf16.mxu0 0
        %1427 = vmatpush1.bf16.msra.mxu0 %v1407
        %1428 = vmatprep.subr.bf16.mxu0 0
        %1429 = vmatpush1.bf16.msra.mxu0 %v1408
        %1430 = vmatprep.subr.bf16.mxu0 0
        %1431 = vmatpush1.bf16.msra.mxu0 %v1409
        %1432 = vmatprep.subr.bf16.mxu0 0
        %1433 = vmatpush1.bf16.msra.mxu0 %v1410
        %1434 = vmatprep.subr.bf16.mxu0 0
        %1435 = vmatpush1.bf16.msra.mxu0 %v1411
        %1436 = vmatprep.subr.bf16.mxu0 0
        %1437 = vmatpush1.bf16.msra.mxu0 0
        %1438 = vmatprep.subr.bf16.mxu0 0
        %1439 = vmatpush1.bf16.msra.mxu0 0
        %1440 = vmatprep.subr.bf16.mxu0 0
        %1441 = vmatpush1.bf16.msra.mxu0 0
        %1442 = vmatprep.subr.bf16.mxu0 0
        %1443 = vmatpush1.bf16.msra.mxu0 0
        %1444 = vmatprep.subr.bf16.mxu0 0
        %1445 = vmatpush1.bf16.msra.mxu0 0
        %1446 = vmatprep.subr.bf16.mxu0 0
        %1447 = vmatpush1.bf16.msra.mxu0 0
        %1448 = vmatprep.subr.bf16.mxu0 0
        %1449 = vmatpush1.bf16.msra.mxu0 0
        %1450 = vmatprep.subr.bf16.mxu0 0
        %1451 = vmatpush1.bf16.msra.mxu0 0
        %1452 = vmatprep.mubr.bf16.mxu0 0
        %1453 = vmatmul.mubr.bf16.gmra.mrb[0].mxu0 %v1341
        %v1454 = vpop.f32.mrb[0].mxu0
        %v1455 = vadd.f32 %v1370, %v1454
        %v1456 = vpop.f32.mrb[0].mxu0
        %v1457 = vpop.f32.mrb[0].mxu0
        %v1458 = vadd.f32 %v1370, %v1457
        %v1459 = vpop.f32.mrb[0].mxu0
        %1460 = vmatprep.mubr.bf16.mxu0 0
        %1461 = vmatmul.mubr.bf16.gmra.mrb[0].mxu0 %v1342
        %v1462 = vpop.f32.mrb[0].mxu0
        %v1463 = vadd.f32 %v1370, %v1462
        %v1464 = vpop.f32.mrb[0].mxu0
        %v1465 = vpop.f32.mrb[0].mxu0
        %v1466 = vadd.f32 %v1370, %v1465
        %v1467 = vpop.f32.mrb[0].mxu0
        %1468 = vmatprep.mubr.bf16.mxu0 0
        %1469 = vmatmul.mubr.bf16.gmra.mrb[0].mxu0 %v1343
        %v1470 = vpop.f32.mrb[0].mxu0
        %v1471 = vadd.f32 %v1370, %v1470
        %v1472 = vpop.f32.mrb[0].mxu0
        %v1473 = vpop.f32.mrb[0].mxu0
        %v1474 = vadd.f32 %v1370, %v1473
        %v1475 = vpop.f32.mrb[0].mxu0
        %1476 = vmatprep.mubr.bf16.mxu0 0
        %1477 = vmatmul.mubr.bf16.gmra.mrb[0].mxu0 %v1344
        %v1478 = vpop.f32.mrb[0].mxu0
        %v1479 = vadd.f32 %v1370, %v1478
        %v1480 = vpop.f32.mrb[0].mxu0
        %v1481 = vpop.f32.mrb[0].mxu0
        %v1482 = vadd.f32 %v1370, %v1481
        %v1483 = vpop.f32.mrb[0].mxu0
        %1484 = vmatprep.mubr.bf16.mxu0 0
        %1485 = vmatmul.mubr.bf16.gmra.mrb[0].mxu0 %v1345
        %v1486 = vpop.f32.mrb[0].mxu0
        %v1487 = vadd.f32 %v1370, %v1486
        %v1488 = vpop.f32.mrb[0].mxu0
        %v1489 = vpop.f32.mrb[0].mxu0
        %v1490 = vadd.f32 %v1370, %v1489
        %v1491 = vpop.f32.mrb[0].mxu0
        %1492 = vmatprep.mubr.bf16.mxu0 0
        %1493 = vmatmul.mubr.bf16.gmra.mrb[0].mxu0 %v1346
        %v1494 = vpop.f32.mrb[0].mxu0
        %v1495 = vadd.f32 %v1370, %v1494
        %v1496 = vpop.f32.mrb[0].mxu0
        %v1497 = vpop.f32.mrb[0].mxu0
        %v1498 = vadd.f32 %v1370, %v1497
        %v1499 = vpop.f32.mrb[0].mxu0
        %1500 = vmatprep.mubr.bf16.mxu0 0
        %1501 = vmatmul.mubr.bf16.gmra.mrb[0].mxu0 %v1347
        %v1502 = vpop.f32.mrb[0].mxu0
        %v1503 = vadd.f32 %v1370, %v1502
        %v1504 = vpop.f32.mrb[0].mxu0
        %v1505 = vpop.f32.mrb[0].mxu0
        %v1506 = vadd.f32 %v1370, %v1505
        %v1507 = vpop.f32.mrb[0].mxu0
        %1508 = vmatprep.mubr.bf16.mxu0 0
        %1509 = vmatmul.mubr.bf16.gmra.mrb[0].mxu0 %v1348
        %v1510 = vpop.f32.mrb[0].mxu0
        %v1511 = vadd.f32 %v1370, %v1510
        %v1512 = vpop.f32.mrb[0].mxu0
        %v1513 = vpop.f32.mrb[0].mxu0
        %v1514 = vadd.f32 %v1370, %v1513
        %v1515 = vpop.f32.mrb[0].mxu0
        %1516 = vdwg.mxu0
        %v1517 = vld [vmem:[#allocation16] sm:$0xf]
        %v1518 = vld [vmem:[#allocation16 + $0x4] sm:$0xf]
        %v1519 = vld [vmem:[#allocation16 + $0x8] sm:$0xf]
        %v1520 = vld [vmem:[#allocation16 + $0xc] sm:$0xf]
        %v1521 = vld [vmem:[#allocation16 + $0x10] sm:$0xf]
        %v1522 = vld [vmem:[#allocation16 + $0x14] sm:$0xf]
        %v1523 = vld [vmem:[#allocation16 + $0x18] sm:$0xf]
        %v1524 = vld [vmem:[#allocation16 + $0x1c] sm:$0xf]
        %v1525 = vld [vmem:[#allocation16 + $0x20] sm:$0xf]
        %v1526 = vld [vmem:[#allocation16 + $0x24] sm:$0xf]
        %v1527 = vld [vmem:[#allocation16 + $0x28] sm:$0xf]
        %v1528 = vld [vmem:[#allocation16 + $0x2c] sm:$0xf]
        %v1529 = vld [vmem:[#allocation16 + $0x30] sm:$0xf]
        %v1530 = vld [vmem:[#allocation16 + $0x34] sm:$0xf]
        %v1531 = vld [vmem:[#allocation16 + $0x38] sm:$0xf]
        %v1532 = vld [vmem:[#allocation16 + $0x3c] sm:$0xf]
        %v1533 = vld [vmem:[#allocation17] sm:$0x1]
        %v1535 = vlaneseq
        %v1536 = vshrl.u32 %v1535, 7
        %v1537 = vsub.s32 0, %v1536
        %v1538 = vrot.slane %v1533, %v1537
        %v1556 = vunpack.c.l.b16 %v1517
        %v1557 = vunpack.c.l.b16 %v1518
        %v1558 = vunpack.c.l.b16 %v1519
        %v1559 = vunpack.c.l.b16 %v1520
        %v1560 = vunpack.c.l.b16 %v1521
        %v1561 = vunpack.c.l.b16 %v1522
        %v1562 = vunpack.c.l.b16 %v1523
        %v1563 = vunpack.c.l.b16 %v1524
        %v1564 = vunpack.c.l.b16 %v1525
        %v1565 = vunpack.c.l.b16 %v1526
        %v1566 = vunpack.c.l.b16 %v1527
        %v1567 = vunpack.c.l.b16 %v1528
        %v1568 = vunpack.c.l.b16 %v1529
        %v1569 = vunpack.c.l.b16 %v1530
        %v1570 = vunpack.c.l.b16 %v1531
        %v1571 = vunpack.c.l.b16 %v1532
        %v1572 = vpack.c.b16 %v1557, %v1556
        %v1573 = vpack.c.b16 %v1559, %v1558
        %v1574 = vpack.c.b16 %v1561, %v1560
        %v1575 = vpack.c.b16 %v1563, %v1562
        %v1576 = vpack.c.b16 %v1565, %v1564
        %v1577 = vpack.c.b16 %v1567, %v1566
        %v1578 = vpack.c.b16 %v1569, %v1568
        %v1579 = vpack.c.b16 %v1571, %v1570
        %1588 = vmatprep.subr.bf16.mxu0 0
        %1589 = vmatpush1.bf16.msra.mxu0 %v1572
        %1590 = vmatprep.subr.bf16.mxu0 0
        %1591 = vmatpush1.bf16.msra.mxu0 %v1573
        %1592 = vmatprep.subr.bf16.mxu0 0
        %1593 = vmatpush1.bf16.msra.mxu0 %v1574
        %1594 = vmatprep.subr.bf16.mxu0 0
        %1595 = vmatpush1.bf16.msra.mxu0 %v1575
        %1596 = vmatprep.subr.bf16.mxu0 0
        %1597 = vmatpush1.bf16.msra.mxu0 %v1576
        %1598 = vmatprep.subr.bf16.mxu0 0
        %1599 = vmatpush1.bf16.msra.mxu0 %v1577
        %1600 = vmatprep.subr.bf16.mxu0 0
        %1601 = vmatpush1.bf16.msra.mxu0 %v1578
        %1602 = vmatprep.subr.bf16.mxu0 0
        %1603 = vmatpush1.bf16.msra.mxu0 %v1579
        %1604 = vmatprep.subr.bf16.mxu0 0
        %1605 = vmatpush1.bf16.msra.mxu0 0
        %1606 = vmatprep.subr.bf16.mxu0 0
        %1607 = vmatpush1.bf16.msra.mxu0 0
        %1608 = vmatprep.subr.bf16.mxu0 0
        %1609 = vmatpush1.bf16.msra.mxu0 0
        %1610 = vmatprep.subr.bf16.mxu0 0
        %1611 = vmatpush1.bf16.msra.mxu0 0
        %1612 = vmatprep.subr.bf16.mxu0 0
        %1613 = vmatpush1.bf16.msra.mxu0 0
        %1614 = vmatprep.subr.bf16.mxu0 0
        %1615 = vmatpush1.bf16.msra.mxu0 0
        %1616 = vmatprep.subr.bf16.mxu0 0
        %1617 = vmatpush1.bf16.msra.mxu0 0
        %1618 = vmatprep.subr.bf16.mxu0 0
        %1619 = vmatpush1.bf16.msra.mxu0 0
        %1620 = vmatprep.mubr.bf16.mxu0 0
        %1621 = vmatmul.mubr.bf16.gmra.mrb[0].mxu0 %v1341
        %v1622 = vpop.f32.mrb[0].mxu0
        %v1623 = vadd.f32 %v1538, %v1622
        %v1624 = vpop.f32.mrb[0].mxu0
        %v1625 = vpop.f32.mrb[0].mxu0
        %v1626 = vadd.f32 %v1538, %v1625
        %v1627 = vpop.f32.mrb[0].mxu0
        %1628 = vmatprep.mubr.bf16.mxu0 0
        %1629 = vmatmul.mubr.bf16.gmra.mrb[0].mxu0 %v1342
        %v1630 = vpop.f32.mrb[0].mxu0
        %v1631 = vadd.f32 %v1538, %v1630
        %v1632 = vpop.f32.mrb[0].mxu0
        %v1633 = vpop.f32.mrb[0].mxu0
        %v1634 = vadd.f32 %v1538, %v1633
        %v1635 = vpop.f32.mrb[0].mxu0
        %1636 = vmatprep.mubr.bf16.mxu0 0
        %1637 = vmatmul.mubr.bf16.gmra.mrb[0].mxu0 %v1343
        %v1638 = vpop.f32.mrb[0].mxu0
        %v1639 = vadd.f32 %v1538, %v1638
        %v1640 = vpop.f32.mrb[0].mxu0
        %v1641 = vpop.f32.mrb[0].mxu0
        %v1642 = vadd.f32 %v1538, %v1641
        %v1643 = vpop.f32.mrb[0].mxu0
        %1644 = vmatprep.mubr.bf16.mxu0 0
        %1645 = vmatmul.mubr.bf16.gmra.mrb[0].mxu0 %v1344
        %v1646 = vpop.f32.mrb[0].mxu0
        %v1647 = vadd.f32 %v1538, %v1646
        %v1648 = vpop.f32.mrb[0].mxu0
        %v1649 = vpop.f32.mrb[0].mxu0
        %v1650 = vadd.f32 %v1538, %v1649
        %v1651 = vpop.f32.mrb[0].mxu0
        %1652 = vmatprep.mubr.bf16.mxu0 0
        %1653 = vmatmul.mubr.bf16.gmra.mrb[0].mxu0 %v1345
        %v1654 = vpop.f32.mrb[0].mxu0
        %v1655 = vadd.f32 %v1538, %v1654
        %v1656 = vpop.f32.mrb[0].mxu0
        %v1657 = vpop.f32.mrb[0].mxu0
        %v1658 = vadd.f32 %v1538, %v1657
        %v1659 = vpop.f32.mrb[0].mxu0
        %1660 = vmatprep.mubr.bf16.mxu0 0
        %1661 = vmatmul.mubr.bf16.gmra.mrb[0].mxu0 %v1346
        %v1662 = vpop.f32.mrb[0].mxu0
        %v1663 = vadd.f32 %v1538, %v1662
        %v1664 = vpop.f32.mrb[0].mxu0
        %v1665 = vpop.f32.mrb[0].mxu0
        %v1666 = vadd.f32 %v1538, %v1665
        %v1667 = vpop.f32.mrb[0].mxu0
        %1668 = vmatprep.mubr.bf16.mxu0 0
        %1669 = vmatmul.mubr.bf16.gmra.mrb[0].mxu0 %v1347
        %v1670 = vpop.f32.mrb[0].mxu0
        %v1671 = vadd.f32 %v1538, %v1670
        %v1672 = vpop.f32.mrb[0].mxu0
        %v1673 = vpop.f32.mrb[0].mxu0
        %v1674 = vadd.f32 %v1538, %v1673
        %v1675 = vpop.f32.mrb[0].mxu0
        %1676 = vmatprep.mubr.bf16.mxu0 0
        %1677 = vmatmul.mubr.bf16.gmra.mrb[0].mxu0 %v1348
        %v1678 = vpop.f32.mrb[0].mxu0
        %v1679 = vadd.f32 %v1538, %v1678
        %v1680 = vpop.f32.mrb[0].mxu0
        %v1681 = vpop.f32.mrb[0].mxu0
        %v1682 = vadd.f32 %v1538, %v1681
        %v1683 = vpop.f32.mrb[0].mxu0
        %1684 = vdwg.mxu0
        %v1685 = vld [vmem:[%s679] sm:$0xff]
        %v1686 = vld [vmem:[%s679 + $0x8] sm:$0xff]
        %v1687 = vld [vmem:[%s679 + $0x10] sm:$0xff]
        %v1688 = vld [vmem:[%s679 + $0x18] sm:$0xff]
        %v1689 = vld [vmem:[%s679 + $0x20] sm:$0xff]
        %v1690 = vld [vmem:[%s679 + $0x28] sm:$0xff]
        %v1691 = vld [vmem:[%s679 + $0x30] sm:$0xff]
        %v1692 = vld [vmem:[%s679 + $0x38] sm:$0xff]
        %v1693 = vld [vmem:[%s679 + $0x40] sm:$0xff]
        %v1694 = vld [vmem:[%s679 + $0x48] sm:$0xff]
        %v1695 = vld [vmem:[%s679 + $0x50] sm:$0xff]
        %v1696 = vld [vmem:[%s679 + $0x58] sm:$0xff]
        %v1697 = vld [vmem:[%s679 + $0x60] sm:$0xff]
        %v1698 = vld [vmem:[%s679 + $0x68] sm:$0xff]
        %v1699 = vld [vmem:[%s679 + $0x70] sm:$0xff]
        %v1700 = vld [vmem:[%s679 + $0x78] sm:$0xff]
        %v1701 = vmul.f32 %v1685, %v1623
        %v1702 = vmul.f32 %v1686, %v1626
        %v1703 = vmul.f32 %v1687, %v1631
        %v1704 = vmul.f32 %v1688, %v1634
        %v1705 = vmul.f32 %v1689, %v1639
        %v1706 = vmul.f32 %v1690, %v1642
        %v1707 = vmul.f32 %v1691, %v1647
        %v1708 = vmul.f32 %v1692, %v1650
        %v1709 = vmul.f32 %v1693, %v1655
        %v1710 = vmul.f32 %v1694, %v1658
        %v1711 = vmul.f32 %v1695, %v1663
        %v1712 = vmul.f32 %v1696, %v1666
        %v1713 = vmul.f32 %v1697, %v1671
        %v1714 = vmul.f32 %v1698, %v1674
        %v1715 = vmul.f32 %v1699, %v1679
        %v1716 = vmul.f32 %v1700, %v1682
        %v1717 = vadd.f32 %v1455, %v1701
        %v1718 = vadd.f32 %v1458, %v1702
        %v1719 = vadd.f32 %v1463, %v1703
        %v1720 = vadd.f32 %v1466, %v1704
        %v1721 = vadd.f32 %v1471, %v1705
        %v1722 = vadd.f32 %v1474, %v1706
        %v1723 = vadd.f32 %v1479, %v1707
        %v1724 = vadd.f32 %v1482, %v1708
        %v1725 = vadd.f32 %v1487, %v1709
        %v1726 = vadd.f32 %v1490, %v1710
        %v1727 = vadd.f32 %v1495, %v1711
        %v1728 = vadd.f32 %v1498, %v1712
        %v1729 = vadd.f32 %v1503, %v1713
        %v1730 = vadd.f32 %v1506, %v1714
        %v1731 = vadd.f32 %v1511, %v1715
        %v1732 = vadd.f32 %v1514, %v1716
        %v1733 = vpack.c.bf16 %v1718, %v1717
        %v1734 = vpack.c.bf16 %v1720, %v1719
        %v1735 = vpack.c.bf16 %v1722, %v1721
        %v1736 = vpack.c.bf16 %v1724, %v1723
        %v1737 = vpack.c.bf16 %v1726, %v1725
        %v1738 = vpack.c.bf16 %v1728, %v1727
        %v1739 = vpack.c.bf16 %v1730, %v1729
        %v1740 = vpack.c.bf16 %v1732, %v1731
        %v1741 = vld [vmem:[#allocation19] sm:$0xf]
        %v1742 = vld [vmem:[#allocation19 + $0x4] sm:$0xf]
        %v1743 = vld [vmem:[#allocation19 + $0x8] sm:$0xf]
        %v1744 = vld [vmem:[#allocation19 + $0xc] sm:$0xf]
        %v1745 = vld [vmem:[#allocation19 + $0x10] sm:$0xf]
        %v1746 = vld [vmem:[#allocation19 + $0x14] sm:$0xf]
        %v1747 = vld [vmem:[#allocation19 + $0x18] sm:$0xf]
        %v1748 = vld [vmem:[#allocation19 + $0x1c] sm:$0xf]
        %v1749 = vld [vmem:[#allocation20] sm:$0x1]
        %v1751 = vlaneseq
        %v1752 = vshrl.u32 %v1751, 7
        %v1753 = vsub.s32 0, %v1752
        %v1754 = vrot.slane %v1749, %v1753
        %v1764 = vunpack.c.l.b16 %v1741
        %v1765 = vunpack.c.l.b16 %v1742
        %v1766 = vunpack.c.l.b16 %v1743
        %v1767 = vunpack.c.l.b16 %v1744
        %v1768 = vunpack.c.l.b16 %v1745
        %v1769 = vunpack.c.l.b16 %v1746
        %v1770 = vunpack.c.l.b16 %v1747
        %v1771 = vunpack.c.l.b16 %v1748
        %v1772 = vpack.c.b16 %v1765, %v1764
        %v1773 = vpack.c.b16 %v1767, %v1766
        %v1774 = vpack.c.b16 %v1769, %v1768
        %v1775 = vpack.c.b16 %v1771, %v1770
        %vm1780 = vcmask 523264
        %v1782 = vsel %vm1780, %v1733, 0
        %v1785 = vsel %vm1780, %v1734, 0
        %v1788 = vsel %vm1780, %v1735, 0
        %v1791 = vsel %vm1780, %v1736, 0
        %v1794 = vsel %vm1780, %v1737, 0
        %v1797 = vsel %vm1780, %v1738, 0
        %v1800 = vsel %vm1780, %v1739, 0
        %v1803 = vsel %vm1780, %v1740, 0
        %1805 = vmatprep.subr.bf16.mxu0 0
        %1806 = vmatpush1.bf16.msra.mxu0 %v1772
        %1807 = vmatprep.subr.bf16.mxu0 0
        %1808 = vmatpush1.bf16.msra.mxu0 %v1773
        %1809 = vmatprep.subr.bf16.mxu0 0
        %1810 = vmatpush1.bf16.msra.mxu0 %v1774
        %1811 = vmatprep.subr.bf16.mxu0 0
        %1812 = vmatpush1.bf16.msra.mxu0 %v1775
        %1813 = vmatprep.subr.bf16.mxu0 0
        %1814 = vmatpush1.bf16.msra.mxu0 0
        %1815 = vmatprep.subr.bf16.mxu0 0
        %1816 = vmatpush1.bf16.msra.mxu0 0
        %1817 = vmatprep.subr.bf16.mxu0 0
        %1818 = vmatpush1.bf16.msra.mxu0 0
        %1819 = vmatprep.subr.bf16.mxu0 0
        %1820 = vmatpush1.bf16.msra.mxu0 0
        %1821 = vmatprep.subr.bf16.mxu0 0
        %1822 = vmatpush1.bf16.msra.mxu0 0
        %1823 = vmatprep.subr.bf16.mxu0 0
        %1824 = vmatpush1.bf16.msra.mxu0 0
        %1825 = vmatprep.subr.bf16.mxu0 0
        %1826 = vmatpush1.bf16.msra.mxu0 0
        %1827 = vmatprep.subr.bf16.mxu0 0
        %1828 = vmatpush1.bf16.msra.mxu0 0
        %1829 = vmatprep.subr.bf16.mxu0 0
        %1830 = vmatpush1.bf16.msra.mxu0 0
        %1831 = vmatprep.subr.bf16.mxu0 0
        %1832 = vmatpush1.bf16.msra.mxu0 0
        %1833 = vmatprep.subr.bf16.mxu0 0
        %1834 = vmatpush1.bf16.msra.mxu0 0
        %1835 = vmatprep.subr.bf16.mxu0 0
        %1836 = vmatpush1.bf16.msra.mxu0 0
        %1837 = vmatprep.mubr.bf16.mxu0 0
        %1838 = vmatmul.mubr.bf16.gmra.mrb[0].mxu0 %v1782
        %v1839 = vpop.f32.mrb[0].mxu0
        %v1840 = vadd.f32 %v1754, %v1839
        %v1841 = vpop.f32.mrb[0].mxu0
        %v1842 = vpop.f32.mrb[0].mxu0
        %v1843 = vadd.f32 %v1754, %v1842
        %v1844 = vpop.f32.mrb[0].mxu0
        %1845 = vmatprep.mubr.bf16.mxu0 0
        %1846 = vmatmul.mubr.bf16.gmra.mrb[0].mxu0 %v1785
        %v1847 = vpop.f32.mrb[0].mxu0
        %v1848 = vadd.f32 %v1754, %v1847
        %v1849 = vpop.f32.mrb[0].mxu0
        %v1850 = vpop.f32.mrb[0].mxu0
        %v1851 = vadd.f32 %v1754, %v1850
        %v1852 = vpop.f32.mrb[0].mxu0
        %1853 = vmatprep.mubr.bf16.mxu0 0
        %1854 = vmatmul.mubr.bf16.gmra.mrb[0].mxu0 %v1788
        %v1855 = vpop.f32.mrb[0].mxu0
        %v1856 = vadd.f32 %v1754, %v1855
        %v1857 = vpop.f32.mrb[0].mxu0
        %v1858 = vpop.f32.mrb[0].mxu0
        %v1859 = vadd.f32 %v1754, %v1858
        %v1860 = vpop.f32.mrb[0].mxu0
        %1861 = vmatprep.mubr.bf16.mxu0 0
        %1862 = vmatmul.mubr.bf16.gmra.mrb[0].mxu0 %v1791
        %v1863 = vpop.f32.mrb[0].mxu0
        %v1864 = vadd.f32 %v1754, %v1863
        %v1865 = vpop.f32.mrb[0].mxu0
        %v1866 = vpop.f32.mrb[0].mxu0
        %v1867 = vadd.f32 %v1754, %v1866
        %v1868 = vpop.f32.mrb[0].mxu0
        %1869 = vmatprep.mubr.bf16.mxu0 0
        %1870 = vmatmul.mubr.bf16.gmra.mrb[0].mxu0 %v1794
        %v1871 = vpop.f32.mrb[0].mxu0
        %v1872 = vadd.f32 %v1754, %v1871
        %v1873 = vpop.f32.mrb[0].mxu0
        %v1874 = vpop.f32.mrb[0].mxu0
        %v1875 = vadd.f32 %v1754, %v1874
        %v1876 = vpop.f32.mrb[0].mxu0
        %1877 = vmatprep.mubr.bf16.mxu0 0
        %1878 = vmatmul.mubr.bf16.gmra.mrb[0].mxu0 %v1797
        %v1879 = vpop.f32.mrb[0].mxu0
        %v1880 = vadd.f32 %v1754, %v1879
        %v1881 = vpop.f32.mrb[0].mxu0
        %v1882 = vpop.f32.mrb[0].mxu0
        %v1883 = vadd.f32 %v1754, %v1882
        %v1884 = vpop.f32.mrb[0].mxu0
        %1885 = vmatprep.mubr.bf16.mxu0 0
        %1886 = vmatmul.mubr.bf16.gmra.mrb[0].mxu0 %v1800
        %v1887 = vpop.f32.mrb[0].mxu0
        %v1888 = vadd.f32 %v1754, %v1887
        %v1889 = vpop.f32.mrb[0].mxu0
        %v1890 = vpop.f32.mrb[0].mxu0
        %v1891 = vadd.f32 %v1754, %v1890
        %v1892 = vpop.f32.mrb[0].mxu0
        %1893 = vmatprep.mubr.bf16.mxu0 0
        %1894 = vmatmul.mubr.bf16.gmra.mrb[0].mxu0 %v1803
        %v1895 = vpop.f32.mrb[0].mxu0
        %v1896 = vadd.f32 %v1754, %v1895
        %v1897 = vpop.f32.mrb[0].mxu0
        %v1898 = vpop.f32.mrb[0].mxu0
        %v1899 = vadd.f32 %v1754, %v1898
        %v1900 = vpop.f32.mrb[0].mxu0
        %1901 = vdwg.mxu0
        %v1902 = vmax.f32 %v1840, 0.0
        %v1903 = vmax.f32 %v1843, 0.0
        %v1904 = vmax.f32 %v1848, 0.0
        %v1905 = vmax.f32 %v1851, 0.0
        %v1906 = vmax.f32 %v1856, 0.0
        %v1907 = vmax.f32 %v1859, 0.0
        %v1908 = vmax.f32 %v1864, 0.0
        %v1909 = vmax.f32 %v1867, 0.0
        %v1910 = vmax.f32 %v1872, 0.0
        %v1911 = vmax.f32 %v1875, 0.0
        %v1912 = vmax.f32 %v1880, 0.0
        %v1913 = vmax.f32 %v1883, 0.0
        %v1914 = vmax.f32 %v1888, 0.0
        %v1915 = vmax.f32 %v1891, 0.0
        %v1916 = vmax.f32 %v1896, 0.0
        %v1917 = vmax.f32 %v1899, 0.0
        %v1918 = vpack.c.bf16 %v1903, %v1902
        %v1919 = vpack.c.bf16 %v1905, %v1904
        %v1920 = vpack.c.bf16 %v1907, %v1906
        %v1921 = vpack.c.bf16 %v1909, %v1908
        %v1922 = vpack.c.bf16 %v1911, %v1910
        %v1923 = vpack.c.bf16 %v1913, %v1912
        %v1924 = vpack.c.bf16 %v1915, %v1914
        %v1925 = vpack.c.bf16 %v1917, %v1916
        %v1926 = vld [vmem:[#allocation22] sm:$0xff]
        %v1927 = vld [vmem:[#allocation22 + $0x8] sm:$0xff]
        %v1928 = vld [vmem:[#allocation22 + $0x10] sm:$0xff]
        %v1929 = vld [vmem:[#allocation22 + $0x18] sm:$0xff]
        %v1930 = vld [vmem:[#allocation22 + $0x20] sm:$0xff]
        %v1931 = vld [vmem:[#allocation22 + $0x28] sm:$0xff]
        %v1932 = vld [vmem:[#allocation22 + $0x30] sm:$0xff]
        %v1933 = vld [vmem:[#allocation22 + $0x38] sm:$0xff]
        %v1934 = vld [vmem:[#allocation22 + $0x40] sm:$0xff]
        %v1935 = vld [vmem:[#allocation22 + $0x48] sm:$0xff]
        %v1936 = vld [vmem:[#allocation22 + $0x50] sm:$0xff]
        %v1937 = vld [vmem:[#allocation22 + $0x58] sm:$0xff]
        %v1938 = vld [vmem:[#allocation22 + $0x60] sm:$0xff]
        %v1939 = vld [vmem:[#allocation22 + $0x68] sm:$0xff]
        %v1940 = vld [vmem:[#allocation22 + $0x70] sm:$0xff]
        %v1941 = vld [vmem:[#allocation22 + $0x78] sm:$0xff]
        %v1942 = vld [vmem:[#allocation23] sm:$0x3]
        %v1944 = vlaneseq
        %v1945 = vshrl.u32 %v1944, 7
        %v1946 = vsub.s32 0, %v1945
        %v1947 = vrot.slane %v1942, %v1946
        %v1948 = vlaneseq
        %v1949 = vshrl.u32 %v1948, 7
        %v1950 = vsub.s32 1, %v1949
        %v1951 = vrot.slane %v1942, %v1950
        %v1970 = vunpack.c.l.b16 %v1926
        %v1971 = vunpack.c.h.b16 %v1926
        %v1972 = vunpack.c.l.b16 %v1927
        %v1973 = vunpack.c.h.b16 %v1927
        %v1974 = vunpack.c.l.b16 %v1928
        %v1975 = vunpack.c.h.b16 %v1928
        %v1976 = vunpack.c.l.b16 %v1929
        %v1977 = vunpack.c.h.b16 %v1929
        %v1978 = vunpack.c.l.b16 %v1930
        %v1979 = vunpack.c.h.b16 %v1930
        %v1980 = vunpack.c.l.b16 %v1931
        %v1981 = vunpack.c.h.b16 %v1931
        %v1982 = vunpack.c.l.b16 %v1932
        %v1983 = vunpack.c.h.b16 %v1932
        %v1984 = vunpack.c.l.b16 %v1933
        %v1985 = vunpack.c.h.b16 %v1933
        %v1986 = vunpack.c.l.b16 %v1934
        %v1987 = vunpack.c.h.b16 %v1934
        %v1988 = vunpack.c.l.b16 %v1935
        %v1989 = vunpack.c.h.b16 %v1935
        %v1990 = vunpack.c.l.b16 %v1936
        %v1991 = vunpack.c.h.b16 %v1936
        %v1992 = vunpack.c.l.b16 %v1937
        %v1993 = vunpack.c.h.b16 %v1937
        %v1994 = vunpack.c.l.b16 %v1938
        %v1995 = vunpack.c.h.b16 %v1938
        %v1996 = vunpack.c.l.b16 %v1939
        %v1997 = vunpack.c.h.b16 %v1939
        %v1998 = vunpack.c.l.b16 %v1940
        %v1999 = vunpack.c.h.b16 %v1940
        %v2000 = vunpack.c.l.b16 %v1941
        %v2001 = vunpack.c.h.b16 %v1941
        %v2002 = vpack.c.b16 %v1972, %v1970
        %v2003 = vpack.c.b16 %v1973, %v1971
        %v2004 = vpack.c.b16 %v1976, %v1974
        %v2005 = vpack.c.b16 %v1977, %v1975
        %v2006 = vpack.c.b16 %v1980, %v1978
        %v2007 = vpack.c.b16 %v1981, %v1979
        %v2008 = vpack.c.b16 %v1984, %v1982
        %v2009 = vpack.c.b16 %v1985, %v1983
        %v2010 = vpack.c.b16 %v1988, %v1986
        %v2011 = vpack.c.b16 %v1989, %v1987
        %v2012 = vpack.c.b16 %v1992, %v1990
        %v2013 = vpack.c.b16 %v1993, %v1991
        %v2014 = vpack.c.b16 %v1996, %v1994
        %v2015 = vpack.c.b16 %v1997, %v1995
        %v2016 = vpack.c.b16 %v2000, %v1998
        %v2017 = vpack.c.b16 %v2001, %v1999
        %2034 = vmatprep.subr.bf16.mxu0 %v2003
        %2035 = vmatpush1.bf16.msra.mxu0 %v2002
        %2036 = vmatprep.subr.bf16.mxu0 %v2005
        %2037 = vmatpush1.bf16.msra.mxu0 %v2004
        %2038 = vmatprep.subr.bf16.mxu0 %v2007
        %2039 = vmatpush1.bf16.msra.mxu0 %v2006
        %2040 = vmatprep.subr.bf16.mxu0 %v2009
        %2041 = vmatpush1.bf16.msra.mxu0 %v2008
        %2042 = vmatprep.subr.bf16.mxu0 %v2011
        %2043 = vmatpush1.bf16.msra.mxu0 %v2010
        %2044 = vmatprep.subr.bf16.mxu0 %v2013
        %2045 = vmatpush1.bf16.msra.mxu0 %v2012
        %2046 = vmatprep.subr.bf16.mxu0 %v2015
        %2047 = vmatpush1.bf16.msra.mxu0 %v2014
        %2048 = vmatprep.subr.bf16.mxu0 %v2017
        %2049 = vmatpush1.bf16.msra.mxu0 %v2016
        %2050 = vmatprep.subr.bf16.mxu0 0
        %2051 = vmatpush1.bf16.msra.mxu0 0
        %2052 = vmatprep.subr.bf16.mxu0 0
        %2053 = vmatpush1.bf16.msra.mxu0 0
        %2054 = vmatprep.subr.bf16.mxu0 0
        %2055 = vmatpush1.bf16.msra.mxu0 0
        %2056 = vmatprep.subr.bf16.mxu0 0
        %2057 = vmatpush1.bf16.msra.mxu0 0
        %2058 = vmatprep.subr.bf16.mxu0 0
        %2059 = vmatpush1.bf16.msra.mxu0 0
        %2060 = vmatprep.subr.bf16.mxu0 0
        %2061 = vmatpush1.bf16.msra.mxu0 0
        %2062 = vmatprep.subr.bf16.mxu0 0
        %2063 = vmatpush1.bf16.msra.mxu0 0
        %2064 = vmatprep.subr.bf16.mxu0 0
        %2065 = vmatpush1.bf16.msra.mxu0 0
        %2066 = vmatprep.mubr.bf16.mxu0 0
        %2067 = vmatmul.mubr.bf16.gmra.mrb[0].mxu0 %v1918
        %v2068 = vpop.f32.mrb[0].mxu0
        %v2069 = vadd.f32 %v1947, %v2068
        %v2070 = vpop.f32.mrb[0].mxu0
        %v2071 = vadd.f32 %v1951, %v2070
        %v2072 = vpop.f32.mrb[0].mxu0
        %v2073 = vadd.f32 %v1947, %v2072
        %v2074 = vpop.f32.mrb[0].mxu0
        %v2075 = vadd.f32 %v1951, %v2074
        %2076 = vmatprep.mubr.bf16.mxu0 0
        %2077 = vmatmul.mubr.bf16.gmra.mrb[0].mxu0 %v1919
        %v2078 = vpop.f32.mrb[0].mxu0
        %v2079 = vadd.f32 %v1947, %v2078
        %v2080 = vpop.f32.mrb[0].mxu0
        %v2081 = vadd.f32 %v1951, %v2080
        %v2082 = vpop.f32.mrb[0].mxu0
        %v2083 = vadd.f32 %v1947, %v2082
        %v2084 = vpop.f32.mrb[0].mxu0
        %v2085 = vadd.f32 %v1951, %v2084
        %2086 = vmatprep.mubr.bf16.mxu0 0
        %2087 = vmatmul.mubr.bf16.gmra.mrb[0].mxu0 %v1920
        %v2088 = vpop.f32.mrb[0].mxu0
        %v2089 = vadd.f32 %v1947, %v2088
        %v2090 = vpop.f32.mrb[0].mxu0
        %v2091 = vadd.f32 %v1951, %v2090
        %v2092 = vpop.f32.mrb[0].mxu0
        %v2093 = vadd.f32 %v1947, %v2092
        %v2094 = vpop.f32.mrb[0].mxu0
        %v2095 = vadd.f32 %v1951, %v2094
        %2096 = vmatprep.mubr.bf16.mxu0 0
        %2097 = vmatmul.mubr.bf16.gmra.mrb[0].mxu0 %v1921
        %v2098 = vpop.f32.mrb[0].mxu0
        %v2099 = vadd.f32 %v1947, %v2098
        %v2100 = vpop.f32.mrb[0].mxu0
        %v2101 = vadd.f32 %v1951, %v2100
        %v2102 = vpop.f32.mrb[0].mxu0
        %v2103 = vadd.f32 %v1947, %v2102
        %v2104 = vpop.f32.mrb[0].mxu0
        %v2105 = vadd.f32 %v1951, %v2104
        %2106 = vmatprep.mubr.bf16.mxu0 0
        %2107 = vmatmul.mubr.bf16.gmra.mrb[0].mxu0 %v1922
        %v2108 = vpop.f32.mrb[0].mxu0
        %v2109 = vadd.f32 %v1947, %v2108
        %v2110 = vpop.f32.mrb[0].mxu0
        %v2111 = vadd.f32 %v1951, %v2110
        %v2112 = vpop.f32.mrb[0].mxu0
        %v2113 = vadd.f32 %v1947, %v2112
        %v2114 = vpop.f32.mrb[0].mxu0
        %v2115 = vadd.f32 %v1951, %v2114
        %2116 = vmatprep.mubr.bf16.mxu0 0
        %2117 = vmatmul.mubr.bf16.gmra.mrb[0].mxu0 %v1923
        %v2118 = vpop.f32.mrb[0].mxu0
        %v2119 = vadd.f32 %v1947, %v2118
        %v2120 = vpop.f32.mrb[0].mxu0
        %v2121 = vadd.f32 %v1951, %v2120
        %v2122 = vpop.f32.mrb[0].mxu0
        %v2123 = vadd.f32 %v1947, %v2122
        %v2124 = vpop.f32.mrb[0].mxu0
        %v2125 = vadd.f32 %v1951, %v2124
        %2126 = vmatprep.mubr.bf16.mxu0 0
        %2127 = vmatmul.mubr.bf16.gmra.mrb[0].mxu0 %v1924
        %v2128 = vpop.f32.mrb[0].mxu0
        %v2129 = vadd.f32 %v1947, %v2128
        %v2130 = vpop.f32.mrb[0].mxu0
        %v2131 = vadd.f32 %v1951, %v2130
        %v2132 = vpop.f32.mrb[0].mxu0
        %v2133 = vadd.f32 %v1947, %v2132
        %v2134 = vpop.f32.mrb[0].mxu0
        %v2135 = vadd.f32 %v1951, %v2134
        %2136 = vmatprep.mubr.bf16.mxu0 0
        %2137 = vmatmul.mubr.bf16.gmra.mrb[0].mxu0 %v1925
        %v2138 = vpop.f32.mrb[0].mxu0
        %v2139 = vadd.f32 %v1947, %v2138
        %v2140 = vpop.f32.mrb[0].mxu0
        %v2141 = vadd.f32 %v1951, %v2140
        %v2142 = vpop.f32.mrb[0].mxu0
        %v2143 = vadd.f32 %v1947, %v2142
        %v2144 = vpop.f32.mrb[0].mxu0
        %v2145 = vadd.f32 %v1951, %v2144
        %2146 = vdwg.mxu0
        %2147 = vst.msk [vmem:[%s776] sm:$0xff] %vm1780, %v1717
        %2148 = vst.msk [vmem:[%s776 + $0x8] sm:$0xff] %vm1780, %v1718
        %2149 = vst.msk [vmem:[%s776 + $0x10] sm:$0xff] %vm1780, %v1719
        %2150 = vst.msk [vmem:[%s776 + $0x18] sm:$0xff] %vm1780, %v1720
        %2151 = vst.msk [vmem:[%s776 + $0x20] sm:$0xff] %vm1780, %v1721
        %2152 = vst.msk [vmem:[%s776 + $0x28] sm:$0xff] %vm1780, %v1722
        %2153 = vst.msk [vmem:[%s776 + $0x30] sm:$0xff] %vm1780, %v1723
        %2154 = vst.msk [vmem:[%s776 + $0x38] sm:$0xff] %vm1780, %v1724
        %2155 = vst.msk [vmem:[%s776 + $0x40] sm:$0xff] %vm1780, %v1725
        %2156 = vst.msk [vmem:[%s776 + $0x48] sm:$0xff] %vm1780, %v1726
        %2157 = vst.msk [vmem:[%s776 + $0x50] sm:$0xff] %vm1780, %v1727
        %2158 = vst.msk [vmem:[%s776 + $0x58] sm:$0xff] %vm1780, %v1728
        %2159 = vst.msk [vmem:[%s776 + $0x60] sm:$0xff] %vm1780, %v1729
        %2160 = vst.msk [vmem:[%s776 + $0x68] sm:$0xff] %vm1780, %v1730
        %2161 = vst.msk [vmem:[%s776 + $0x70] sm:$0xff] %vm1780, %v1731
        %2162 = vst.msk [vmem:[%s776 + $0x78] sm:$0xff] %vm1780, %v1732
        %2163 = vst [vmem:[%s783] sm:$0xff] %v2069
        %2164 = vst [vmem:[%s783 + $0x8] sm:$0xff] %v2071
        %2165 = vst [vmem:[%s783 + $0x10] sm:$0xff] %v2073
        %2166 = vst [vmem:[%s783 + $0x18] sm:$0xff] %v2075
        %2167 = vst [vmem:[%s783 + $0x20] sm:$0xff] %v2079
        %2168 = vst [vmem:[%s783 + $0x28] sm:$0xff] %v2081
        %2169 = vst [vmem:[%s783 + $0x30] sm:$0xff] %v2083
        %2170 = vst [vmem:[%s783 + $0x38] sm:$0xff] %v2085
        %2171 = vst [vmem:[%s783 + $0x40] sm:$0xff] %v2089
        %2172 = vst [vmem:[%s783 + $0x48] sm:$0xff] %v2091
        %2173 = vst [vmem:[%s783 + $0x50] sm:$0xff] %v2093
        %2174 = vst [vmem:[%s783 + $0x58] sm:$0xff] %v2095
        %2175 = vst [vmem:[%s783 + $0x60] sm:$0xff] %v2099
        %2176 = vst [vmem:[%s783 + $0x68] sm:$0xff] %v2101
        %2177 = vst [vmem:[%s783 + $0x70] sm:$0xff] %v2103
        %2178 = vst [vmem:[%s783 + $0x78] sm:$0xff] %v2105
        %2179 = vst [vmem:[%s783 + $0x80] sm:$0xff] %v2109
        %2180 = vst [vmem:[%s783 + $0x88] sm:$0xff] %v2111
        %2181 = vst [vmem:[%s783 + $0x90] sm:$0xff] %v2113
        %2182 = vst [vmem:[%s783 + $0x98] sm:$0xff] %v2115
        %2183 = vst [vmem:[%s783 + $0xa0] sm:$0xff] %v2119
        %2184 = vst [vmem:[%s783 + $0xa8] sm:$0xff] %v2121
        %2185 = vst [vmem:[%s783 + $0xb0] sm:$0xff] %v2123
        %2186 = vst [vmem:[%s783 + $0xb8] sm:$0xff] %v2125
        %2187 = vst [vmem:[%s783 + $0xc0] sm:$0xff] %v2129
        %2188 = vst [vmem:[%s783 + $0xc8] sm:$0xff] %v2131
        %2189 = vst [vmem:[%s783 + $0xd0] sm:$0xff] %v2133
        %2190 = vst [vmem:[%s783 + $0xd8] sm:$0xff] %v2135
        %2191 = vst [vmem:[%s783 + $0xe0] sm:$0xff] %v2139
        %2192 = vst [vmem:[%s783 + $0xe8] sm:$0xff] %v2141
        %2193 = vst [vmem:[%s783 + $0xf0] sm:$0xff] %v2143
        %2194 = vst [vmem:[%s783 + $0xf8] sm:$0xff] %v2145
        %2195 = vst.msk [vmem:[%s790] sm:$0xff] %vm1780, %v1455
        %2196 = vst.msk [vmem:[%s790 + $0x8] sm:$0xff] %vm1780, %v1458
        %2197 = vst.msk [vmem:[%s790 + $0x10] sm:$0xff] %vm1780, %v1463
        %2198 = vst.msk [vmem:[%s790 + $0x18] sm:$0xff] %vm1780, %v1466
        %2199 = vst.msk [vmem:[%s790 + $0x20] sm:$0xff] %vm1780, %v1471
        %2200 = vst.msk [vmem:[%s790 + $0x28] sm:$0xff] %vm1780, %v1474
        %2201 = vst.msk [vmem:[%s790 + $0x30] sm:$0xff] %vm1780, %v1479
        %2202 = vst.msk [vmem:[%s790 + $0x38] sm:$0xff] %vm1780, %v1482
        %2203 = vst.msk [vmem:[%s790 + $0x40] sm:$0xff] %vm1780, %v1487
        %2204 = vst.msk [vmem:[%s790 + $0x48] sm:$0xff] %vm1780, %v1490
        %2205 = vst.msk [vmem:[%s790 + $0x50] sm:$0xff] %vm1780, %v1495
        %2206 = vst.msk [vmem:[%s790 + $0x58] sm:$0xff] %vm1780, %v1498
        %2207 = vst.msk [vmem:[%s790 + $0x60] sm:$0xff] %vm1780, %v1503
        %2208 = vst.msk [vmem:[%s790 + $0x68] sm:$0xff] %vm1780, %v1506
        %2209 = vst.msk [vmem:[%s790 + $0x70] sm:$0xff] %vm1780, %v1511
        %2210 = vst.msk [vmem:[%s790 + $0x78] sm:$0xff] %vm1780, %v1514
        %2211 = vst.msk [vmem:[%s797] sm:$0xff] %vm1780, %v1623
        %2212 = vst.msk [vmem:[%s797 + $0x8] sm:$0xff] %vm1780, %v1626
        %2213 = vst.msk [vmem:[%s797 + $0x10] sm:$0xff] %vm1780, %v1631
        %2214 = vst.msk [vmem:[%s797 + $0x18] sm:$0xff] %vm1780, %v1634
        %2215 = vst.msk [vmem:[%s797 + $0x20] sm:$0xff] %vm1780, %v1639
        %2216 = vst.msk [vmem:[%s797 + $0x28] sm:$0xff] %vm1780, %v1642
        %2217 = vst.msk [vmem:[%s797 + $0x30] sm:$0xff] %vm1780, %v1647
        %2218 = vst.msk [vmem:[%s797 + $0x38] sm:$0xff] %vm1780, %v1650
        %2219 = vst.msk [vmem:[%s797 + $0x40] sm:$0xff] %vm1780, %v1655
        %2220 = vst.msk [vmem:[%s797 + $0x48] sm:$0xff] %vm1780, %v1658
        %2221 = vst.msk [vmem:[%s797 + $0x50] sm:$0xff] %vm1780, %v1663
        %2222 = vst.msk [vmem:[%s797 + $0x58] sm:$0xff] %vm1780, %v1666
        %2223 = vst.msk [vmem:[%s797 + $0x60] sm:$0xff] %vm1780, %v1671
        %2224 = vst.msk [vmem:[%s797 + $0x68] sm:$0xff] %vm1780, %v1674
        %2225 = vst.msk [vmem:[%s797 + $0x70] sm:$0xff] %vm1780, %v1679
        %2226 = vst.msk [vmem:[%s797 + $0x78] sm:$0xff] %vm1780, %v1682
        %s2227 = sand.u32 %s362, 1
        %s2228 = scalar_lea.sflag [#allocation4], %s2227
        %s2229 = sand.u32 %s362, 1
        %s2230 = smul.addr %s2229, 128
        %s2231 = scalar_lea.vmem [#allocation25], %s2230
        %s2232 = sand.u32 %s50, 1
        %s2233 = scalar_lea.sflag [#allocation27], %s2232
        %s2234 = sand.u32 %s388, 1
        %s2235 = smul.addr %s2234, 256
        %s2236 = scalar_lea.vmem [#allocation26], %s2235
        %s2237 = sand.u32 %s50, 1
        %s2238 = scalar_lea.sflag [#allocation27], %s2237
        %s2239 = sand.u32 %s414, 1
        %s2240 = smul.addr %s2239, 128
        %s2241 = scalar_lea.vmem [#allocation28], %s2240
        %s2242 = sand.u32 %s440, 1
        %s2243 = scalar_lea.sflag [#allocation30], %s2242
        %s2244 = sand.u32 %s440, 1
        %s2245 = smul.addr %s2244, 128
        %s2246 = scalar_lea.vmem [#allocation29], %s2245
        // Predicated region
        $region133: #{pavae_forward.1} parent=75 // pred_check
          %p2247 = pneg %p372
        $region134: #{pavae_forward.1} parent=75 // pred_check_branch
          %2249 = sbr.rel (%p2247) target = $region136
        $region135: #{pavae_forward.1} parent=75 // pred_region
          %s2250 = smul.u32 16, %s50
          %s2252 = ssub.s32 2048, 2048
          %2253 = vsyncadd %s2228, %s2252
          %s2254 = smul.addr %s2250, 128
          %s2255 = scalar_lea.hbm %s14, %s2254
          %s2256 = sshll.u32 %s2231, 4
          %s2257 = int_to_ptr.vmem [resolvable:$true] %s2256
          %2262 = dma.vmem_to_hbm [thread:$0]  %s2257, 2048, %s2255, %s2228, 128, 128, 8
        $region136: #{pavae_forward.1} parent=75 // pred_fallthru
          _
        // Predicated region
        $region137: #{pavae_forward.1} parent=75 // pred_check
          %p2263 = pneg %p398
        $region138: #{pavae_forward.1} parent=75 // pred_check_branch
          %2265 = sbr.rel (%p2263) target = $region140
        $region139: #{pavae_forward.1} parent=75 // pred_region
          %s2266 = smul.u32 16, %s50
          %s2268 = ssub.s32 4096, 4096
          %2269 = vsyncadd %s2233, %s2268
          %s2270 = smul.addr %s2266, 2
          %s2271 = smul.addr %s2270, 128
          %s2272 = scalar_lea.hbm %s15, %s2271
          %s2273 = sshll.u32 %s2236, 4
          %s2274 = int_to_ptr.vmem [resolvable:$true] %s2273
          %2279 = dma.vmem_to_hbm [thread:$0]  %s2274, 4096, %s2272, %s2233, 256, 256, 16
        $region140: #{pavae_forward.1} parent=75 // pred_fallthru
          _
        // Predicated region
        $region141: #{pavae_forward.1} parent=75 // pred_check
          %p2280 = pneg %p424
        $region142: #{pavae_forward.1} parent=75 // pred_check_branch
          %2282 = sbr.rel (%p2280) target = $region144
        $region143: #{pavae_forward.1} parent=75 // pred_region
          %s2283 = smul.u32 16, %s50
          %s2285 = ssub.s32 2048, 2048
          %2286 = vsyncadd %s2238, %s2285
          %s2287 = smul.addr %s2283, 128
          %s2288 = scalar_lea.hbm %s16, %s2287
          %s2289 = sshll.u32 %s2241, 4
          %s2290 = int_to_ptr.vmem [resolvable:$true] %s2289
          %2295 = dma.vmem_to_hbm [thread:$0]  %s2290, 2048, %s2288, %s2238, 128, 128, 8
        $region144: #{pavae_forward.1} parent=75 // pred_fallthru
          _
        // Predicated region
        $region145: #{pavae_forward.1} parent=75 // pred_check
          %p2296 = pneg %p450
        $region146: #{pavae_forward.1} parent=75 // pred_check_branch
          %2298 = sbr.rel (%p2296) target = $region148
        $region147: #{pavae_forward.1} parent=75 // pred_region
          %s2299 = smul.u32 16, %s50
          %s2301 = ssub.s32 2048, 2048
          %2302 = vsyncadd %s2243, %s2301
          %s2303 = smul.addr %s2299, 128
          %s2304 = scalar_lea.hbm %s17, %s2303
          %s2305 = sshll.u32 %s2246, 4
          %s2306 = int_to_ptr.vmem [resolvable:$true] %s2305
          %2311 = dma.vmem_to_hbm [thread:$0]  %s2306, 2048, %s2304, %s2243, 128, 128, 8
        $region148: #{pavae_forward.1} parent=75 // pred_fallthru
          _
      $region76: #{pavae_forward.1} parent=5 // pred_fallthru
        _
      %p2312 = scmp.le.s32.totalorder 2, %s45
      // Predicated region
      $region149: #{pavae_forward.1} parent=5 // pred_check
        %p2313 = pneg %p2312
      $region150: #{pavae_forward.1} parent=5 // pred_check_branch
        %2315 = sbr.rel (%p2313) target = $region152
      $region151: #{pavae_forward.1} parent=5 // pred_region
        %s2316 = ssub.s32 %s45, 2
        // Predicated region
        $region153: #{pavae_forward.1} parent=151 // pred_check
          %p2317 = pneg %p378
        $region154: #{pavae_forward.1} parent=151 // pred_check_branch
          %2319 = sbr.rel (%p2317) target = $region156
        $region155: #{pavae_forward.1} parent=151 // pred_region
          %s2320 = sand.u32 %s363, 1
          %s2321 = scalar_lea.sflag [#allocation4], %s2320
          %s2322 = sand.u32 %s363, 1
          %s2323 = smul.addr %s2322, 128
          %s2324 = scalar_lea.vmem [#allocation25], %s2323
          %2325 = dma.done %s2321, 2048
        $region156: #{pavae_forward.1} parent=151 // pred_fallthru
          _
        // Predicated region
        $region157: #{pavae_forward.1} parent=151 // pred_check
          %p2326 = pneg %p404
        $region158: #{pavae_forward.1} parent=151 // pred_check_branch
          %2328 = sbr.rel (%p2326) target = $region160
        $region159: #{pavae_forward.1} parent=151 // pred_region
          %s2329 = sand.u32 %s51, 1
          %s2330 = scalar_lea.sflag [#allocation27], %s2329
          %s2331 = sand.u32 %s389, 1
          %s2332 = smul.addr %s2331, 256
          %s2333 = scalar_lea.vmem [#allocation26], %s2332
          %2334 = dma.done %s2330, 4096
        $region160: #{pavae_forward.1} parent=151 // pred_fallthru
          _
        // Predicated region
        $region161: #{pavae_forward.1} parent=151 // pred_check
          %p2335 = pneg %p430
        $region162: #{pavae_forward.1} parent=151 // pred_check_branch
          %2337 = sbr.rel (%p2335) target = $region164
        $region163: #{pavae_forward.1} parent=151 // pred_region
          %s2338 = sand.u32 %s51, 1
          %s2339 = scalar_lea.sflag [#allocation27], %s2338
          %s2340 = sand.u32 %s415, 1
          %s2341 = smul.addr %s2340, 128
          %s2342 = scalar_lea.vmem [#allocation28], %s2341
          %2343 = dma.done %s2339, 2048
        $region164: #{pavae_forward.1} parent=151 // pred_fallthru
          _
        // Predicated region
        $region165: #{pavae_forward.1} parent=151 // pred_check
          %p2344 = pneg %p456
        $region166: #{pavae_forward.1} parent=151 // pred_check_branch
          %2346 = sbr.rel (%p2344) target = $region168
        $region167: #{pavae_forward.1} parent=151 // pred_region
          %s2347 = sand.u32 %s441, 1
          %s2348 = scalar_lea.sflag [#allocation30], %s2347
          %s2349 = sand.u32 %s441, 1
          %s2350 = smul.addr %s2349, 128
          %s2351 = scalar_lea.vmem [#allocation29], %s2350
          %2352 = dma.done %s2348, 2048
        $region168: #{pavae_forward.1} parent=151 // pred_fallthru
          _
      $region152: #{pavae_forward.1} parent=5 // pred_fallthru
        _
    $region6: #{pavae_forward.1} parent=1 // loop_footer
      %s49 = sadd.s32 1, %s45
    $region7: #{pavae_forward.1} parent=1 // loop_footer_branch
      %44 = sbr.rel target = $region3
    $region8: #{pavae_forward.1} parent=1 // loop_exit
      _
    %2353 = vsyncpa [#allocation3], 1
    %s2354 = scalar_lea.sflag [#allocation3], 1
    %2355 = vsyncpa %s2354, 1
    %2356 = vsyncpa [#allocation6], 1
    %s2357 = scalar_lea.sflag [#allocation6], 1
    %2358 = vsyncpa %s2357, 1
    %2359 = vsyncpa [#allocation9], 1
    %2360 = vsyncpa [#allocation12], 1
    %2361 = vsyncpa [#allocation15], 1
    %2362 = vsyncpa [#allocation18], 1
    %2363 = vsyncpa [#allocation21], 1
    %2364 = vsyncpa [#allocation24], 1
    %2365 = vsyncpa [#allocation4], 1
    %s2366 = scalar_lea.sflag [#allocation4], 1
    %2367 = vsyncpa %s2366, 1
    %2368 = vsyncpa [#allocation27], 1
    %s2369 = scalar_lea.sflag [#allocation27], 1
    %2370 = vsyncpa %s2369, 1
    %2371 = vsyncpa [#allocation30], 1
    %s2372 = scalar_lea.sflag [#allocation30], 1
    %2373 = vsyncpa %s2372, 1

</llo_original>
